<compile_context>
chip_gen: v7x
topology: tpu7x:2x2x1
jax: 0.10.0
libtpu: 0.0.40
codegen_flags: <defaults>
</compile_context>

<pallas_src>
import functools

import jax
import jax.numpy as jnp
from jax.experimental import pallas as pl
from jax.experimental.pallas import tpu as pltpu


def _round_up(x: int, m: int) -> int:
    return (x + m - 1) // m * m


def _pick_row_tile(rows: int, cap: int) -> int:
    """Largest divisor of `rows` that is <= cap (always >= 1)."""
    t = max(1, min(cap, rows))
    while rows % t:
        t -= 1
    return t


# ----------------------------- Pallas kernel ------------------------------- #
def _patchify_kernel(x_ref, w_ref, o_ref, *, p, wp, pc, n_pad):
    # x_ref: (tr, p, Wp*p*C)  contiguous image patch-rows (streamed)
    # w_ref: (p, p*C, n_pad)  resident weight, rows indexed by kw*C + c
    # o_ref: (tr, Wp, n_pad)  output patches for these rows (lane-dense)
    tr = x_ref.shape[0]
    for j in range(wp):                      # static unroll: Wp patches / row
        acc = jnp.zeros((tr, n_pad), jnp.float32)
        for kh in range(p):                  # static unroll: p rows / patch
            lhs = x_ref[:, kh, j * pc:(j + 1) * pc]          # (tr, p*C)
            acc = acc + jnp.dot(lhs, w_ref[kh],
                                preferred_element_type=jnp.float32)
        o_ref[:, j, :] = acc.astype(o_ref.dtype)


# ------------------------------ Module port -------------------------------- #
def init_patchify_params(key, patch_size: int = 5, latent_dim: int = 128,
                         in_channels: int = 3):
    # Mimic PyTorch Conv2d default init: U(-1/sqrt(fan_in), 1/sqrt(fan_in)).
    fan_in = in_channels * patch_size * patch_size
    bound = 1.0 / (fan_in ** 0.5)
    return jax.random.uniform(
        key, (latent_dim, in_channels, patch_size, patch_size),
        dtype=jnp.float32, minval=-bound, maxval=bound)


def patchify_linear_forward(x, w, *, out_dtype=None, tr_max: int = 128):
    """x: (B, H, W, C), w: (latent_dim, C, p, p) (torch Conv2d layout).
    Returns (B, H//p, W//p, latent_dim) in `out_dtype` (default: x.dtype)."""
    B, H, W, C = x.shape
    O, Cw, p, p2 = w.shape
    assert Cw == C and p == p2
    Hp, Wp = H // p, W // p
    if (H, W) != (Hp * p, Wp * p):           # Conv2d floors; crop remainder
        x = x[:, :Hp * p, :Wp * p, :]
    out_dtype = jnp.dtype(x.dtype if out_dtype is None else out_dtype)

    R = B * Hp                               # image patch-rows
    pC = p * C                               # per-(kh, j) contraction length
    WC = Wp * p * C                          # one image row of one kh slice
    Np = _round_up(O, 128)                   # lane-dense output width

    # Pure contiguous reshape: NO HBM copy of the activations.
    x3 = x.reshape(R, p, WC)
    # (O, C, kh, kw) -> (kh, kw, c, o) -> (p, p*C, O); pad lanes to 128.
    w3 = jnp.transpose(w, (2, 3, 1, 0)).reshape(p, pC, O).astype(x.dtype)
    if Np != O:
        w3 = jnp.pad(w3, ((0, 0), (0, 0), (0, Np - O)))

    # Tile rows: keep >= ~8 grid steps (v7x TC sharding + pipeline depth),
    # stay small enough for VMEM, and divide R exactly (no garbage rows).
    cap = min(tr_max, max(8, pl.cdiv(R, 8)))
    tr = _pick_row_tile(R, cap)
    grid = (R // tr,)

    M, K = R * Wp, p * pC
    cost = pl.CostEstimate(
        flops=2 * M * K * O,
        bytes_accessed=(x.dtype.itemsize * R * p * WC        # activations once
                        + w3.dtype.itemsize * p * pC * Np    # resident weight
                        + out_dtype.itemsize * M * Np),      # output once
        transcendentals=0)

    kernel = functools.partial(_patchify_kernel, p=p, wp=Wp, pc=pC, n_pad=Np)
    out = pl.pallas_call(
        kernel,
        out_shape=jax.ShapeDtypeStruct((R, Wp, Np), out_dtype),
        grid=grid,
        in_specs=[
            # Contiguous slab of `tr` patch-rows, streamed / double-buffered.
            pl.BlockSpec((tr, p, WC), lambda i: (i, 0, 0)),
            # Tiny weight stays resident in VMEM across all grid steps.
            pl.BlockSpec((p, pC, Np), lambda i: (0, 0, 0)),
        ],
        out_specs=pl.BlockSpec((tr, Wp, Np), lambda i: (i, 0, 0)),
        compiler_params=pltpu.CompilerParams(
            dimension_semantics=("parallel",)),
        cost_estimate=cost,
    )(x3, w3)

    if Np != O:
        out = out[:, :, :O]
    return out.reshape(B, Hp, Wp, O)


# --------------------------------- main ------------------------------------ #
if __name__ == "__main__":
    key = jax.random.PRNGKey(0)
    kx, kw = jax.random.split(key)

    patch_size, latent_dim = 5, 128
    B, H, W, C = 2, 20, 20, 3                # small, divisible by patch_size

    x = jax.random.normal(kx, (B, H, W, C), dtype=jnp.float32)
    w = init_patchify_params(kw, patch_size, latent_dim, C)

    out = jax.block_until_ready(patchify_linear_forward(x, w))
    assert out.shape == (B, H // patch_size, W // patch_size, latent_dim)

    # Reference: explicit patch einsum in full f32 precision.
    Hp, Wp = H // patch_size, W // patch_size
    xr = x.reshape(B, Hp, patch_size, Wp, patch_size, C)
    ref = jnp.einsum("bikjlc,ockl->bijo", xr, w,
                     precision=jax.lax.Precision.HIGHEST)
    err = float(jnp.max(jnp.abs(out - ref)))
    # Loose enough to cover MXU f32-pass rounding; indexing bugs are O(1).
    assert jnp.allclose(out, ref, atol=1e-2, rtol=1e-2), err

    # bf16 streaming smoke test (halved HBM traffic path); loose tolerance.
    out_bf = jax.block_until_ready(
        patchify_linear_forward(x.astype(jnp.bfloat16), w,
                                out_dtype=jnp.bfloat16))
    assert out_bf.shape == out.shape
    err_bf = float(jnp.max(jnp.abs(out_bf.astype(jnp.float32) - ref)))
    assert err_bf < 0.1, err_bf

    print("KERNEL_OK")
</pallas_src>

<mosaic_0001>
module attributes {stable_mosaic.version = 11 : i64} {
  func.func @_patchify_kernel(%arg0: i32, %arg1: memref<8x5x60xf32, #tpu.memory_space<vmem>>, %arg2: memref<5x15x128xf32, #tpu.memory_space<vmem>>, %arg3: memref<8x4x128xf32, #tpu.memory_space<vmem>>) attributes {dimension_semantics = [#tpu.dimension_semantics<parallel>], iteration_bounds = array<i64: 1>, scalar_prefetch = 0 : i64, scratch_operands = 0 : i64, tpu.core_type = #tpu.core_type<tc>, window_params = [{transform_indices = @transform_0, window_bounds = array<i64: 8, 5, 60>}, {pipeline_mode = #tpu.pipeline_mode<synchronous>, transform_indices = @transform_1, window_bounds = array<i64: 5, 15, 128>}, {transform_indices = @transform_2, window_bounds = array<i64: 8, 4, 128>}]} {
    %cst = arith.constant 0.000000e+00 : f32
    %0 = vector.broadcast %cst : f32 to vector<8x128xf32>
    %c0 = arith.constant 0 : index
    %c0_0 = arith.constant 0 : index
    %c0_1 = arith.constant 0 : index
    %1 = vector.load %arg1[%c0, %c0_0, %c0_1] : memref<8x5x60xf32, #tpu.memory_space<vmem>>, vector<8x1x15xf32>
    %2 = vector.shape_cast %1 : vector<8x1x15xf32> to vector<8x15xf32>
    %c0_2 = arith.constant 0 : index
    %c0_3 = arith.constant 0 : index
    %c0_4 = arith.constant 0 : index
    %3 = vector.load %arg2[%c0_2, %c0_3, %c0_4] : memref<5x15x128xf32, #tpu.memory_space<vmem>>, vector<1x15x128xf32>
    %4 = vector.shape_cast %3 : vector<1x15x128xf32> to vector<15x128xf32>
    %cst_5 = arith.constant dense<0.000000e+00> : vector<8x128xf32>
    %5 = tpu.matmul %2, %4, %cst_5 {dimension_numbers = #tpu.dot_dimension_numbers<[1], [0], [0], [1], [0, 0, 1, 1], [], []>} : vector<8x15xf32>, vector<15x128xf32>, vector<8x128xf32> -> vector<8x128xf32>
    %6 = arith.addf %0, %5 : vector<8x128xf32>
    %c0_6 = arith.constant 0 : index
    %c1 = arith.constant 1 : index
    %c0_7 = arith.constant 0 : index
    %7 = vector.load %arg1[%c0_6, %c1, %c0_7] : memref<8x5x60xf32, #tpu.memory_space<vmem>>, vector<8x1x15xf32>
    %8 = vector.shape_cast %7 : vector<8x1x15xf32> to vector<8x15xf32>
    %c1_8 = arith.constant 1 : index
    %c0_9 = arith.constant 0 : index
    %c0_10 = arith.constant 0 : index
    %9 = vector.load %arg2[%c1_8, %c0_9, %c0_10] : memref<5x15x128xf32, #tpu.memory_space<vmem>>, vector<1x15x128xf32>
    %10 = vector.shape_cast %9 : vector<1x15x128xf32> to vector<15x128xf32>
    %cst_11 = arith.constant dense<0.000000e+00> : vector<8x128xf32>
    %11 = tpu.matmul %8, %10, %cst_11 {dimension_numbers = #tpu.dot_dimension_numbers<[1], [0], [0], [1], [0, 0, 1, 1], [], []>} : vector<8x15xf32>, vector<15x128xf32>, vector<8x128xf32> -> vector<8x128xf32>
    %12 = arith.addf %6, %11 : vector<8x128xf32>
    %c0_12 = arith.constant 0 : index
    %c2 = arith.constant 2 : index
    %c0_13 = arith.constant 0 : index
    %13 = vector.load %arg1[%c0_12, %c2, %c0_13] : memref<8x5x60xf32, #tpu.memory_space<vmem>>, vector<8x1x15xf32>
    %14 = vector.shape_cast %13 : vector<8x1x15xf32> to vector<8x15xf32>
    %c2_14 = arith.constant 2 : index
    %c0_15 = arith.constant 0 : index
    %c0_16 = arith.constant 0 : index
    %15 = vector.load %arg2[%c2_14, %c0_15, %c0_16] : memref<5x15x128xf32, #tpu.memory_space<vmem>>, vector<1x15x128xf32>
    %16 = vector.shape_cast %15 : vector<1x15x128xf32> to vector<15x128xf32>
    %cst_17 = arith.constant dense<0.000000e+00> : vector<8x128xf32>
    %17 = tpu.matmul %14, %16, %cst_17 {dimension_numbers = #tpu.dot_dimension_numbers<[1], [0], [0], [1], [0, 0, 1, 1], [], []>} : vector<8x15xf32>, vector<15x128xf32>, vector<8x128xf32> -> vector<8x128xf32>
    %18 = arith.addf %12, %17 : vector<8x128xf32>
    %c0_18 = arith.constant 0 : index
    %c3 = arith.constant 3 : index
    %c0_19 = arith.constant 0 : index
    %19 = vector.load %arg1[%c0_18, %c3, %c0_19] : memref<8x5x60xf32, #tpu.memory_space<vmem>>, vector<8x1x15xf32>
    %20 = vector.shape_cast %19 : vector<8x1x15xf32> to vector<8x15xf32>
    %c3_20 = arith.constant 3 : index
    %c0_21 = arith.constant 0 : index
    %c0_22 = arith.constant 0 : index
    %21 = vector.load %arg2[%c3_20, %c0_21, %c0_22] : memref<5x15x128xf32, #tpu.memory_space<vmem>>, vector<1x15x128xf32>
    %22 = vector.shape_cast %21 : vector<1x15x128xf32> to vector<15x128xf32>
    %cst_23 = arith.constant dense<0.000000e+00> : vector<8x128xf32>
    %23 = tpu.matmul %20, %22, %cst_23 {dimension_numbers = #tpu.dot_dimension_numbers<[1], [0], [0], [1], [0, 0, 1, 1], [], []>} : vector<8x15xf32>, vector<15x128xf32>, vector<8x128xf32> -> vector<8x128xf32>
    %24 = arith.addf %18, %23 : vector<8x128xf32>
    %c0_24 = arith.constant 0 : index
    %c4 = arith.constant 4 : index
    %c0_25 = arith.constant 0 : index
    %25 = vector.load %arg1[%c0_24, %c4, %c0_25] : memref<8x5x60xf32, #tpu.memory_space<vmem>>, vector<8x1x15xf32>
    %26 = vector.shape_cast %25 : vector<8x1x15xf32> to vector<8x15xf32>
    %c4_26 = arith.constant 4 : index
    %c0_27 = arith.constant 0 : index
    %c0_28 = arith.constant 0 : index
    %27 = vector.load %arg2[%c4_26, %c0_27, %c0_28] : memref<5x15x128xf32, #tpu.memory_space<vmem>>, vector<1x15x128xf32>
    %28 = vector.shape_cast %27 : vector<1x15x128xf32> to vector<15x128xf32>
    %cst_29 = arith.constant dense<0.000000e+00> : vector<8x128xf32>
    %29 = tpu.matmul %26, %28, %cst_29 {dimension_numbers = #tpu.dot_dimension_numbers<[1], [0], [0], [1], [0, 0, 1, 1], [], []>} : vector<8x15xf32>, vector<15x128xf32>, vector<8x128xf32> -> vector<8x128xf32>
    %30 = arith.addf %24, %29 : vector<8x128xf32>
    %c0_30 = arith.constant 0 : index
    %c0_31 = arith.constant 0 : index
    %c0_32 = arith.constant 0 : index
    %31 = vector.load %arg3[%c0_30, %c0_31, %c0_32] : memref<8x4x128xf32, #tpu.memory_space<vmem>>, vector<8x1x128xf32>
    %32 = vector.shape_cast %31 : vector<8x1x128xf32> to vector<8x128xf32>
    %33 = vector.shape_cast %30 : vector<8x128xf32> to vector<8x1x128xf32>
    tpu.vector_store %arg3[%c0_30, %c0_31, %c0_32], %33 {strides = array<i32>} : memref<8x4x128xf32, #tpu.memory_space<vmem>>, vector<8x1x128xf32>,
    %cst_33 = arith.constant 0.000000e+00 : f32
    %34 = vector.broadcast %cst_33 : f32 to vector<8x128xf32>
    %c0_34 = arith.constant 0 : index
    %c0_35 = arith.constant 0 : index
    %c15 = arith.constant 15 : index
    %35 = vector.load %arg1[%c0_34, %c0_35, %c15] : memref<8x5x60xf32, #tpu.memory_space<vmem>>, vector<8x1x15xf32>
    %36 = vector.shape_cast %35 : vector<8x1x15xf32> to vector<8x15xf32>
    %c0_36 = arith.constant 0 : index
    %c0_37 = arith.constant 0 : index
    %c0_38 = arith.constant 0 : index
    %37 = vector.load %arg2[%c0_36, %c0_37, %c0_38] : memref<5x15x128xf32, #tpu.memory_space<vmem>>, vector<1x15x128xf32>
    %38 = vector.shape_cast %37 : vector<1x15x128xf32> to vector<15x128xf32>
    %cst_39 = arith.constant dense<0.000000e+00> : vector<8x128xf32>
    %39 = tpu.matmul %36, %38, %cst_39 {dimension_numbers = #tpu.dot_dimension_numbers<[1], [0], [0], [1], [0, 0, 1, 1], [], []>} : vector<8x15xf32>, vector<15x128xf32>, vector<8x128xf32> -> vector<8x128xf32>
    %40 = arith.addf %34, %39 : vector<8x128xf32>
    %c0_40 = arith.constant 0 : index
    %c1_41 = arith.constant 1 : index
    %c15_42 = arith.constant 15 : index
    %41 = vector.load %arg1[%c0_40, %c1_41, %c15_42] : memref<8x5x60xf32, #tpu.memory_space<vmem>>, vector<8x1x15xf32>
    %42 = vector.shape_cast %41 : vector<8x1x15xf32> to vector<8x15xf32>
    %c1_43 = arith.constant 1 : index
    %c0_44 = arith.constant 0 : index
    %c0_45 = arith.constant 0 : index
    %43 = vector.load %arg2[%c1_43, %c0_44, %c0_45] : memref<5x15x128xf32, #tpu.memory_space<vmem>>, vector<1x15x128xf32>
    %44 = vector.shape_cast %43 : vector<1x15x128xf32> to vector<15x128xf32>
    %cst_46 = arith.constant dense<0.000000e+00> : vector<8x128xf32>
    %45 = tpu.matmul %42, %44, %cst_46 {dimension_numbers = #tpu.dot_dimension_numbers<[1], [0], [0], [1], [0, 0, 1, 1], [], []>} : vector<8x15xf32>, vector<15x128xf32>, vector<8x128xf32> -> vector<8x128xf32>
    %46 = arith.addf %40, %45 : vector<8x128xf32>
    %c0_47 = arith.constant 0 : index
    %c2_48 = arith.constant 2 : index
    %c15_49 = arith.constant 15 : index
    %47 = vector.load %arg1[%c0_47, %c2_48, %c15_49] : memref<8x5x60xf32, #tpu.memory_space<vmem>>, vector<8x1x15xf32>
    %48 = vector.shape_cast %47 : vector<8x1x15xf32> to vector<8x15xf32>
    %c2_50 = arith.constant 2 : index
    %c0_51 = arith.constant 0 : index
    %c0_52 = arith.constant 0 : index
    %49 = vector.load %arg2[%c2_50, %c0_51, %c0_52] : memref<5x15x128xf32, #tpu.memory_space<vmem>>, vector<1x15x128xf32>
    %50 = vector.shape_cast %49 : vector<1x15x128xf32> to vector<15x128xf32>
    %cst_53 = arith.constant dense<0.000000e+00> : vector<8x128xf32>
    %51 = tpu.matmul %48, %50, %cst_53 {dimension_numbers = #tpu.dot_dimension_numbers<[1], [0], [0], [1], [0, 0, 1, 1], [], []>} : vector<8x15xf32>, vector<15x128xf32>, vector<8x128xf32> -> vector<8x128xf32>
    %52 = arith.addf %46, %51 : vector<8x128xf32>
    %c0_54 = arith.constant 0 : index
    %c3_55 = arith.constant 3 : index
    %c15_56 = arith.constant 15 : index
    %53 = vector.load %arg1[%c0_54, %c3_55, %c15_56] : memref<8x5x60xf32, #tpu.memory_space<vmem>>, vector<8x1x15xf32>
    %54 = vector.shape_cast %53 : vector<8x1x15xf32> to vector<8x15xf32>
    %c3_57 = arith.constant 3 : index
    %c0_58 = arith.constant 0 : index
    %c0_59 = arith.constant 0 : index
    %55 = vector.load %arg2[%c3_57, %c0_58, %c0_59] : memref<5x15x128xf32, #tpu.memory_space<vmem>>, vector<1x15x128xf32>
    %56 = vector.shape_cast %55 : vector<1x15x128xf32> to vector<15x128xf32>
    %cst_60 = arith.constant dense<0.000000e+00> : vector<8x128xf32>
    %57 = tpu.matmul %54, %56, %cst_60 {dimension_numbers = #tpu.dot_dimension_numbers<[1], [0], [0], [1], [0, 0, 1, 1], [], []>} : vector<8x15xf32>, vector<15x128xf32>, vector<8x128xf32> -> vector<8x128xf32>
    %58 = arith.addf %52, %57 : vector<8x128xf32>
    %c0_61 = arith.constant 0 : index
    %c4_62 = arith.constant 4 : index
    %c15_63 = arith.constant 15 : index
    %59 = vector.load %arg1[%c0_61, %c4_62, %c15_63] : memref<8x5x60xf32, #tpu.memory_space<vmem>>, vector<8x1x15xf32>
    %60 = vector.shape_cast %59 : vector<8x1x15xf32> to vector<8x15xf32>
    %c4_64 = arith.constant 4 : index
    %c0_65 = arith.constant 0 : index
    %c0_66 = arith.constant 0 : index
    %61 = vector.load %arg2[%c4_64, %c0_65, %c0_66] : memref<5x15x128xf32, #tpu.memory_space<vmem>>, vector<1x15x128xf32>
    %62 = vector.shape_cast %61 : vector<1x15x128xf32> to vector<15x128xf32>
    %cst_67 = arith.constant dense<0.000000e+00> : vector<8x128xf32>
    %63 = tpu.matmul %60, %62, %cst_67 {dimension_numbers = #tpu.dot_dimension_numbers<[1], [0], [0], [1], [0, 0, 1, 1], [], []>} : vector<8x15xf32>, vector<15x128xf32>, vector<8x128xf32> -> vector<8x128xf32>
    %64 = arith.addf %58, %63 : vector<8x128xf32>
    %c0_68 = arith.constant 0 : index
    %c1_69 = arith.constant 1 : index
    %c0_70 = arith.constant 0 : index
    %65 = vector.load %arg3[%c0_68, %c1_69, %c0_70] : memref<8x4x128xf32, #tpu.memory_space<vmem>>, vector<8x1x128xf32>
    %66 = vector.shape_cast %65 : vector<8x1x128xf32> to vector<8x128xf32>
    %67 = vector.shape_cast %64 : vector<8x128xf32> to vector<8x1x128xf32>
    tpu.vector_store %arg3[%c0_68, %c1_69, %c0_70], %67 {strides = array<i32>} : memref<8x4x128xf32, #tpu.memory_space<vmem>>, vector<8x1x128xf32>,
    %cst_71 = arith.constant 0.000000e+00 : f32
    %68 = vector.broadcast %cst_71 : f32 to vector<8x128xf32>
    %c0_72 = arith.constant 0 : index
    %c0_73 = arith.constant 0 : index
    %c30 = arith.constant 30 : index
    %69 = vector.load %arg1[%c0_72, %c0_73, %c30] : memref<8x5x60xf32, #tpu.memory_space<vmem>>, vector<8x1x15xf32>
    %70 = vector.shape_cast %69 : vector<8x1x15xf32> to vector<8x15xf32>
    %c0_74 = arith.constant 0 : index
    %c0_75 = arith.constant 0 : index
    %c0_76 = arith.constant 0 : index
    %71 = vector.load %arg2[%c0_74, %c0_75, %c0_76] : memref<5x15x128xf32, #tpu.memory_space<vmem>>, vector<1x15x128xf32>
    %72 = vector.shape_cast %71 : vector<1x15x128xf32> to vector<15x128xf32>
    %cst_77 = arith.constant dense<0.000000e+00> : vector<8x128xf32>
    %73 = tpu.matmul %70, %72, %cst_77 {dimension_numbers = #tpu.dot_dimension_numbers<[1], [0], [0], [1], [0, 0, 1, 1], [], []>} : vector<8x15xf32>, vector<15x128xf32>, vector<8x128xf32> -> vector<8x128xf32>
    %74 = arith.addf %68, %73 : vector<8x128xf32>
    %c0_78 = arith.constant 0 : index
    %c1_79 = arith.constant 1 : index
    %c30_80 = arith.constant 30 : index
    %75 = vector.load %arg1[%c0_78, %c1_79, %c30_80] : memref<8x5x60xf32, #tpu.memory_space<vmem>>, vector<8x1x15xf32>
    %76 = vector.shape_cast %75 : vector<8x1x15xf32> to vector<8x15xf32>
    %c1_81 = arith.constant 1 : index
    %c0_82 = arith.constant 0 : index
    %c0_83 = arith.constant 0 : index
    %77 = vector.load %arg2[%c1_81, %c0_82, %c0_83] : memref<5x15x128xf32, #tpu.memory_space<vmem>>, vector<1x15x128xf32>
    %78 = vector.shape_cast %77 : vector<1x15x128xf32> to vector<15x128xf32>
    %cst_84 = arith.constant dense<0.000000e+00> : vector<8x128xf32>
    %79 = tpu.matmul %76, %78, %cst_84 {dimension_numbers = #tpu.dot_dimension_numbers<[1], [0], [0], [1], [0, 0, 1, 1], [], []>} : vector<8x15xf32>, vector<15x128xf32>, vector<8x128xf32> -> vector<8x128xf32>
    %80 = arith.addf %74, %79 : vector<8x128xf32>
    %c0_85 = arith.constant 0 : index
    %c2_86 = arith.constant 2 : index
    %c30_87 = arith.constant 30 : index
    %81 = vector.load %arg1[%c0_85, %c2_86, %c30_87] : memref<8x5x60xf32, #tpu.memory_space<vmem>>, vector<8x1x15xf32>
    %82 = vector.shape_cast %81 : vector<8x1x15xf32> to vector<8x15xf32>
    %c2_88 = arith.constant 2 : index
    %c0_89 = arith.constant 0 : index
    %c0_90 = arith.constant 0 : index
    %83 = vector.load %arg2[%c2_88, %c0_89, %c0_90] : memref<5x15x128xf32, #tpu.memory_space<vmem>>, vector<1x15x128xf32>
    %84 = vector.shape_cast %83 : vector<1x15x128xf32> to vector<15x128xf32>
    %cst_91 = arith.constant dense<0.000000e+00> : vector<8x128xf32>
    %85 = tpu.matmul %82, %84, %cst_91 {dimension_numbers = #tpu.dot_dimension_numbers<[1], [0], [0], [1], [0, 0, 1, 1], [], []>} : vector<8x15xf32>, vector<15x128xf32>, vector<8x128xf32> -> vector<8x128xf32>
    %86 = arith.addf %80, %85 : vector<8x128xf32>
    %c0_92 = arith.constant 0 : index
    %c3_93 = arith.constant 3 : index
    %c30_94 = arith.constant 30 : index
    %87 = vector.load %arg1[%c0_92, %c3_93, %c30_94] : memref<8x5x60xf32, #tpu.memory_space<vmem>>, vector<8x1x15xf32>
    %88 = vector.shape_cast %87 : vector<8x1x15xf32> to vector<8x15xf32>
    %c3_95 = arith.constant 3 : index
    %c0_96 = arith.constant 0 : index
    %c0_97 = arith.constant 0 : index
    %89 = vector.load %arg2[%c3_95, %c0_96, %c0_97] : memref<5x15x128xf32, #tpu.memory_space<vmem>>, vector<1x15x128xf32>
    %90 = vector.shape_cast %89 : vector<1x15x128xf32> to vector<15x128xf32>
    %cst_98 = arith.constant dense<0.000000e+00> : vector<8x128xf32>
    %91 = tpu.matmul %88, %90, %cst_98 {dimension_numbers = #tpu.dot_dimension_numbers<[1], [0], [0], [1], [0, 0, 1, 1], [], []>} : vector<8x15xf32>, vector<15x128xf32>, vector<8x128xf32> -> vector<8x128xf32>
    %92 = arith.addf %86, %91 : vector<8x128xf32>
    %c0_99 = arith.constant 0 : index
    %c4_100 = arith.constant 4 : index
    %c30_101 = arith.constant 30 : index
    %93 = vector.load %arg1[%c0_99, %c4_100, %c30_101] : memref<8x5x60xf32, #tpu.memory_space<vmem>>, vector<8x1x15xf32>
    %94 = vector.shape_cast %93 : vector<8x1x15xf32> to vector<8x15xf32>
    %c4_102 = arith.constant 4 : index
    %c0_103 = arith.constant 0 : index
    %c0_104 = arith.constant 0 : index
    %95 = vector.load %arg2[%c4_102, %c0_103, %c0_104] : memref<5x15x128xf32, #tpu.memory_space<vmem>>, vector<1x15x128xf32>
    %96 = vector.shape_cast %95 : vector<1x15x128xf32> to vector<15x128xf32>
    %cst_105 = arith.constant dense<0.000000e+00> : vector<8x128xf32>
    %97 = tpu.matmul %94, %96, %cst_105 {dimension_numbers = #tpu.dot_dimension_numbers<[1], [0], [0], [1], [0, 0, 1, 1], [], []>} : vector<8x15xf32>, vector<15x128xf32>, vector<8x128xf32> -> vector<8x128xf32>
    %98 = arith.addf %92, %97 : vector<8x128xf32>
    %c0_106 = arith.constant 0 : index
    %c2_107 = arith.constant 2 : index
    %c0_108 = arith.constant 0 : index
    %99 = vector.load %arg3[%c0_106, %c2_107, %c0_108] : memref<8x4x128xf32, #tpu.memory_space<vmem>>, vector<8x1x128xf32>
    %100 = vector.shape_cast %99 : vector<8x1x128xf32> to vector<8x128xf32>
    %101 = vector.shape_cast %98 : vector<8x128xf32> to vector<8x1x128xf32>
    tpu.vector_store %arg3[%c0_106, %c2_107, %c0_108], %101 {strides = array<i32>} : memref<8x4x128xf32, #tpu.memory_space<vmem>>, vector<8x1x128xf32>,
    %cst_109 = arith.constant 0.000000e+00 : f32
    %102 = vector.broadcast %cst_109 : f32 to vector<8x128xf32>
    %c0_110 = arith.constant 0 : index
    %c0_111 = arith.constant 0 : index
    %c45 = arith.constant 45 : index
    %103 = vector.load %arg1[%c0_110, %c0_111, %c45] : memref<8x5x60xf32, #tpu.memory_space<vmem>>, vector<8x1x15xf32>
    %104 = vector.shape_cast %103 : vector<8x1x15xf32> to vector<8x15xf32>
    %c0_112 = arith.constant 0 : index
    %c0_113 = arith.constant 0 : index
    %c0_114 = arith.constant 0 : index
    %105 = vector.load %arg2[%c0_112, %c0_113, %c0_114] : memref<5x15x128xf32, #tpu.memory_space<vmem>>, vector<1x15x128xf32>
    %106 = vector.shape_cast %105 : vector<1x15x128xf32> to vector<15x128xf32>
    %cst_115 = arith.constant dense<0.000000e+00> : vector<8x128xf32>
    %107 = tpu.matmul %104, %106, %cst_115 {dimension_numbers = #tpu.dot_dimension_numbers<[1], [0], [0], [1], [0, 0, 1, 1], [], []>} : vector<8x15xf32>, vector<15x128xf32>, vector<8x128xf32> -> vector<8x128xf32>
    %108 = arith.addf %102, %107 : vector<8x128xf32>
    %c0_116 = arith.constant 0 : index
    %c1_117 = arith.constant 1 : index
    %c45_118 = arith.constant 45 : index
    %109 = vector.load %arg1[%c0_116, %c1_117, %c45_118] : memref<8x5x60xf32, #tpu.memory_space<vmem>>, vector<8x1x15xf32>
    %110 = vector.shape_cast %109 : vector<8x1x15xf32> to vector<8x15xf32>
    %c1_119 = arith.constant 1 : index
    %c0_120 = arith.constant 0 : index
    %c0_121 = arith.constant 0 : index
    %111 = vector.load %arg2[%c1_119, %c0_120, %c0_121] : memref<5x15x128xf32, #tpu.memory_space<vmem>>, vector<1x15x128xf32>
    %112 = vector.shape_cast %111 : vector<1x15x128xf32> to vector<15x128xf32>
    %cst_122 = arith.constant dense<0.000000e+00> : vector<8x128xf32>
    %113 = tpu.matmul %110, %112, %cst_122 {dimension_numbers = #tpu.dot_dimension_numbers<[1], [0], [0], [1], [0, 0, 1, 1], [], []>} : vector<8x15xf32>, vector<15x128xf32>, vector<8x128xf32> -> vector<8x128xf32>
    %114 = arith.addf %108, %113 : vector<8x128xf32>
    %c0_123 = arith.constant 0 : index
    %c2_124 = arith.constant 2 : index
    %c45_125 = arith.constant 45 : index
    %115 = vector.load %arg1[%c0_123, %c2_124, %c45_125] : memref<8x5x60xf32, #tpu.memory_space<vmem>>, vector<8x1x15xf32>
    %116 = vector.shape_cast %115 : vector<8x1x15xf32> to vector<8x15xf32>
    %c2_126 = arith.constant 2 : index
    %c0_127 = arith.constant 0 : index
    %c0_128 = arith.constant 0 : index
    %117 = vector.load %arg2[%c2_126, %c0_127, %c0_128] : memref<5x15x128xf32, #tpu.memory_space<vmem>>, vector<1x15x128xf32>
    %118 = vector.shape_cast %117 : vector<1x15x128xf32> to vector<15x128xf32>
    %cst_129 = arith.constant dense<0.000000e+00> : vector<8x128xf32>
    %119 = tpu.matmul %116, %118, %cst_129 {dimension_numbers = #tpu.dot_dimension_numbers<[1], [0], [0], [1], [0, 0, 1, 1], [], []>} : vector<8x15xf32>, vector<15x128xf32>, vector<8x128xf32> -> vector<8x128xf32>
    %120 = arith.addf %114, %119 : vector<8x128xf32>
    %c0_130 = arith.constant 0 : index
    %c3_131 = arith.constant 3 : index
    %c45_132 = arith.constant 45 : index
    %121 = vector.load %arg1[%c0_130, %c3_131, %c45_132] : memref<8x5x60xf32, #tpu.memory_space<vmem>>, vector<8x1x15xf32>
    %122 = vector.shape_cast %121 : vector<8x1x15xf32> to vector<8x15xf32>
    %c3_133 = arith.constant 3 : index
    %c0_134 = arith.constant 0 : index
    %c0_135 = arith.constant 0 : index
    %123 = vector.load %arg2[%c3_133, %c0_134, %c0_135] : memref<5x15x128xf32, #tpu.memory_space<vmem>>, vector<1x15x128xf32>
    %124 = vector.shape_cast %123 : vector<1x15x128xf32> to vector<15x128xf32>
    %cst_136 = arith.constant dense<0.000000e+00> : vector<8x128xf32>
    %125 = tpu.matmul %122, %124, %cst_136 {dimension_numbers = #tpu.dot_dimension_numbers<[1], [0], [0], [1], [0, 0, 1, 1], [], []>} : vector<8x15xf32>, vector<15x128xf32>, vector<8x128xf32> -> vector<8x128xf32>
    %126 = arith.addf %120, %125 : vector<8x128xf32>
    %c0_137 = arith.constant 0 : index
    %c4_138 = arith.constant 4 : index
    %c45_139 = arith.constant 45 : index
    %127 = vector.load %arg1[%c0_137, %c4_138, %c45_139] : memref<8x5x60xf32, #tpu.memory_space<vmem>>, vector<8x1x15xf32>
    %128 = vector.shape_cast %127 : vector<8x1x15xf32> to vector<8x15xf32>
    %c4_140 = arith.constant 4 : index
    %c0_141 = arith.constant 0 : index
    %c0_142 = arith.constant 0 : index
    %129 = vector.load %arg2[%c4_140, %c0_141, %c0_142] : memref<5x15x128xf32, #tpu.memory_space<vmem>>, vector<1x15x128xf32>
    %130 = vector.shape_cast %129 : vector<1x15x128xf32> to vector<15x128xf32>
    %cst_143 = arith.constant dense<0.000000e+00> : vector<8x128xf32>
    %131 = tpu.matmul %128, %130, %cst_143 {dimension_numbers = #tpu.dot_dimension_numbers<[1], [0], [0], [1], [0, 0, 1, 1], [], []>} : vector<8x15xf32>, vector<15x128xf32>, vector<8x128xf32> -> vector<8x128xf32>
    %132 = arith.addf %126, %131 : vector<8x128xf32>
    %c0_144 = arith.constant 0 : index
    %c3_145 = arith.constant 3 : index
    %c0_146 = arith.constant 0 : index
    %133 = vector.load %arg3[%c0_144, %c3_145, %c0_146] : memref<8x4x128xf32, #tpu.memory_space<vmem>>, vector<8x1x128xf32>
    %134 = vector.shape_cast %133 : vector<8x1x128xf32> to vector<8x128xf32>
    %135 = vector.shape_cast %132 : vector<8x128xf32> to vector<8x1x128xf32>
    tpu.vector_store %arg3[%c0_144, %c3_145, %c0_146], %135 {strides = array<i32>} : memref<8x4x128xf32, #tpu.memory_space<vmem>>, vector<8x1x128xf32>,
    return
  }
  func.func @transform_0(%arg0: i32) -> (i32, i32, i32) {
    %c0_i32 = arith.constant 0 : i32
    %c0_i32_0 = arith.constant 0 : i32
    %c0_i32_1 = arith.constant 0 : i32
    return %arg0, %c0_i32, %c0_i32_0 : i32, i32, i32
  }
  func.func @transform_1(%arg0: i32) -> (i32, i32, i32) {
    %c0_i32 = arith.constant 0 : i32
    %c0_i32_0 = arith.constant 0 : i32
    %c0_i32_1 = arith.constant 0 : i32
    %c0_i32_2 = arith.constant 0 : i32
    return %c0_i32, %c0_i32_0, %c0_i32_1 : i32, i32, i32
  }
  func.func @transform_2(%arg0: i32) -> (i32, i32, i32) {
    %c0_i32 = arith.constant 0 : i32
    %c0_i32_0 = arith.constant 0 : i32
    %c0_i32_1 = arith.constant 0 : i32
    return %arg0, %c0_i32, %c0_i32_0 : i32, i32, i32
  }
}

</mosaic_0001>

<llo_original>
// kernel: tpu_custom_call.1
$region0: #{tpu_custom_call.1}
  #allocation0 [shape = 'u32[]', space=smem, size = 0x4, offset = 0x4, fixed_abs, tag = 'smem constant byte address 0x4 - core index']
  #allocation1 [shape = 'u32[144,128]{1,0:T(1,128)}', space=vmem, size = 0x12000, scoped, tag = 'internal scratch']
  %s0 = inlined_call_operand.vmem [shape: f32[8,5,60], index: 0, kind: input, shape index: {}]
  %s1 = inlined_call_operand.vmem [shape: f32[5,15,128], index: 1, kind: input, shape index: {}]
  %s2 = inlined_call_operand.hbm [shape: f32[8,4,128], index: 2, kind: output, shape index: {}]
  %s3 = sld [smem:[#allocation0]]
  $region18: #{tpu_custom_call.1} parent=0
    _
  %s5 = ssub.s32 1, %s3
  %s6 = scalar_select 0, %s5, %s3
  $region1: #{tpu_custom_call.1} parent=0
    #allocation2 [shape = 'u8[16384]{0}', space=vmem, size = 0x4000, scoped, tag = 'output window, operand 0, single buffered']
    #allocation3 [shape = 's32[1]{0}', space=sflag, size = 0x4, scoped, tag = 'scoped memory for tpu_custom_call.1']
    %7 = vsyncpa [#allocation3], 0
    // Predicated region
    $region2: #{tpu_custom_call.1} parent=1 // pred_check
      _
    $region3: #{tpu_custom_call.1} parent=1 // pred_check_branch
      %9 = sbr.rel (0) target = $region5
    $region4: #{tpu_custom_call.1} parent=1 // pred_region
      _
    $region5: #{tpu_custom_call.1} parent=1 // pred_fallthru
      _
    // Predicated region
    $region6: #{tpu_custom_call.1} parent=1 // pred_check
      _
    $region7: #{tpu_custom_call.1} parent=1 // pred_check_branch
      %11 = sbr.rel (0) target = $region9
    $region8: #{tpu_custom_call.1} parent=1 // pred_region
      _
    $region9: #{tpu_custom_call.1} parent=1 // pred_fallthru
      _
    %v12 = vld [vmem:[%s0] sm:$0x1]
    %v13 = vld [vmem:[%s0 + $0x8] sm:$0x1]
    %v14 = vld [vmem:[%s0 + $0x10] sm:$0x1]
    %v15 = vld [vmem:[%s0 + $0x18] sm:$0x1]
    %v16 = vld [vmem:[%s0 + $0x20] sm:$0x1]
    %v17 = vld [vmem:[%s0 + $0x28] sm:$0x1]
    %v18 = vld [vmem:[%s0 + $0x30] sm:$0x1]
    %v19 = vld [vmem:[%s0 + $0x38] sm:$0x1]
    %v20 = vld [vmem:[%s1] sm:$0xff]
    %v21 = vld [vmem:[%s1 + $0x8] sm:$0x7f]
    %v22 = vld [vmem:[%s0 + $0x1] sm:$0x1]
    %v23 = vld [vmem:[%s0 + $0x9] sm:$0x1]
    %v24 = vld [vmem:[%s0 + $0x11] sm:$0x1]
    %v25 = vld [vmem:[%s0 + $0x19] sm:$0x1]
    %v26 = vld [vmem:[%s0 + $0x21] sm:$0x1]
    %v27 = vld [vmem:[%s0 + $0x29] sm:$0x1]
    %v28 = vld [vmem:[%s0 + $0x31] sm:$0x1]
    %v29 = vld [vmem:[%s0 + $0x39] sm:$0x1]
    %s30 = scalar_lea.vmem %s1, 16
    %v31 = vld [vmem:[%s30] sm:$0xff]
    %v32 = vld [vmem:[%s30 + $0x8] sm:$0x7f]
    %v41 = vrot.slane %v23, 7
    %vm42 = vcmask 1041409
    %v43 = vsel %vm42, %v41, %v22
    %v44 = vrot.slane %v24, 6
    %vm45 = vcmask 1042434
    %v46 = vsel %vm45, %v44, %v43
    %v47 = vrot.slane %v25, 5
    %vm48 = vcmask 1043459
    %v49 = vsel %vm48, %v47, %v46
    %v50 = vrot.slane %v26, 4
    %vm51 = vcmask 1044484
    %v52 = vsel %vm51, %v50, %v49
    %v53 = vrot.slane %v27, 3
    %vm54 = vcmask 1045509
    %v55 = vsel %vm54, %v53, %v52
    %v56 = vrot.slane %v28, 2
    %vm57 = vcmask 1046534
    %v58 = vsel %vm57, %v56, %v55
    %v59 = vrot.slane %v29, 1
    %vm60 = vcmask 1047559
    %v61 = vsel %vm60, %v59, %v58
    %vm62 = vcmask 121856
    %v63 = vsel %vm62, %v61, 0
    %vm65 = vcmask 1046528
    %v67 = vsel %vm65, %v32, 0
    %69 = vmatprep.subr.mxu0 0.0
    %70 = vmatpush1.msra.mxu0 %v31
    %71 = vmatprep.subr.mxu0 0.0
    %72 = vmatpush1.msra.mxu0 %v67
    %73 = vmatprep.subr.mxu0 0.0
    %74 = vmatpush1.msra.mxu0 0.0
    %75 = vmatprep.subr.mxu0 0.0
    %76 = vmatpush1.msra.mxu0 0.0
    %77 = vmatprep.subr.mxu0 0.0
    %78 = vmatpush1.msra.mxu0 0.0
    %79 = vmatprep.subr.mxu0 0.0
    %80 = vmatpush1.msra.mxu0 0.0
    %81 = vmatprep.subr.mxu0 0.0
    %82 = vmatpush1.msra.mxu0 0.0
    %83 = vmatprep.subr.mxu0 0.0
    %84 = vmatpush1.msra.mxu0 0.0
    %85 = vmatprep.subr.mxu0 0.0
    %86 = vmatpush1.msra.mxu0 0.0
    %87 = vmatprep.subr.mxu0 0.0
    %88 = vmatpush1.msra.mxu0 0.0
    %89 = vmatprep.subr.mxu0 0.0
    %90 = vmatpush1.msra.mxu0 0.0
    %91 = vmatprep.subr.mxu0 0.0
    %92 = vmatpush1.msra.mxu0 0.0
    %93 = vmatprep.subr.mxu0 0.0
    %94 = vmatpush1.msra.mxu0 0.0
    %95 = vmatprep.subr.mxu0 0.0
    %96 = vmatpush1.msra.mxu0 0.0
    %97 = vmatprep.subr.mxu0 0.0
    %98 = vmatpush1.msra.mxu0 0.0
    %99 = vmatprep.subr.mxu0 0.0
    %100 = vmatpush1.msra.mxu0 0.0
    %101 = vmatprep.subr.mxu0 0.0
    %102 = vmatpush1.msra.mxu0 0.0
    %103 = vmatprep.subr.mxu0 0.0
    %104 = vmatpush1.msra.mxu0 0.0
    %105 = vmatprep.subr.mxu0 0.0
    %106 = vmatpush1.msra.mxu0 0.0
    %107 = vmatprep.subr.mxu0 0.0
    %108 = vmatpush1.msra.mxu0 0.0
    %109 = vmatprep.subr.mxu0 0.0
    %110 = vmatpush1.msra.mxu0 0.0
    %111 = vmatprep.subr.mxu0 0.0
    %112 = vmatpush1.msra.mxu0 0.0
    %113 = vmatprep.subr.mxu0 0.0
    %114 = vmatpush1.msra.mxu0 0.0
    %115 = vmatprep.subr.mxu0 0.0
    %116 = vmatpush1.msra.mxu0 0.0
    %117 = vmatprep.subr.mxu0 0.0
    %118 = vmatpush1.msra.mxu0 0.0
    %119 = vmatprep.subr.mxu0 0.0
    %120 = vmatpush1.msra.mxu0 0.0
    %121 = vmatprep.subr.mxu0 0.0
    %122 = vmatpush1.msra.mxu0 0.0
    %123 = vmatprep.subr.mxu0 0.0
    %124 = vmatpush1.msra.mxu0 0.0
    %125 = vmatprep.subr.mxu0 0.0
    %126 = vmatpush1.msra.mxu0 0.0
    %127 = vmatprep.subr.mxu0 0.0
    %128 = vmatpush1.msra.mxu0 0.0
    %129 = vmatprep.subr.mxu0 0.0
    %130 = vmatpush1.msra.mxu0 0.0
    %131 = vmatprep.subr.mxu0 0.0
    %132 = vmatpush1.msra.mxu0 0.0
    %133 = vmatprep.mubr.f32.mxu0 0.0
    %134 = vmatmul.mubr.f32.gmra.mrb[0].mxu0 %v63
    %v135 = vpop.f32.mrb[0].mxu0
    %v136 = vadd.f32 0.0, %v135
    %v137 = vpop.f32.mrb[0].mxu0
    %138 = vdwg.mxu0
    %v147 = vrot.slane %v13, 7
    %v148 = vsel %vm42, %v147, %v12
    %v149 = vrot.slane %v14, 6
    %v150 = vsel %vm45, %v149, %v148
    %v151 = vrot.slane %v15, 5
    %v152 = vsel %vm48, %v151, %v150
    %v153 = vrot.slane %v16, 4
    %v154 = vsel %vm51, %v153, %v152
    %v155 = vrot.slane %v17, 3
    %v156 = vsel %vm54, %v155, %v154
    %v157 = vrot.slane %v18, 2
    %v158 = vsel %vm57, %v157, %v156
    %v159 = vrot.slane %v19, 1
    %v160 = vsel %vm60, %v159, %v158
    %v161 = vsel %vm62, %v160, 0
    %v164 = vsel %vm65, %v21, 0
    %166 = vmatprep.subr.mxu0 0.0
    %167 = vmatpush1.msra.mxu0 %v20
    %168 = vmatprep.subr.mxu0 0.0
    %169 = vmatpush1.msra.mxu0 %v164
    %170 = vmatprep.subr.mxu0 0.0
    %171 = vmatpush1.msra.mxu0 0.0
    %172 = vmatprep.subr.mxu0 0.0
    %173 = vmatpush1.msra.mxu0 0.0
    %174 = vmatprep.subr.mxu0 0.0
    %175 = vmatpush1.msra.mxu0 0.0
    %176 = vmatprep.subr.mxu0 0.0
    %177 = vmatpush1.msra.mxu0 0.0
    %178 = vmatprep.subr.mxu0 0.0
    %179 = vmatpush1.msra.mxu0 0.0
    %180 = vmatprep.subr.mxu0 0.0
    %181 = vmatpush1.msra.mxu0 0.0
    %182 = vmatprep.subr.mxu0 0.0
    %183 = vmatpush1.msra.mxu0 0.0
    %184 = vmatprep.subr.mxu0 0.0
    %185 = vmatpush1.msra.mxu0 0.0
    %186 = vmatprep.subr.mxu0 0.0
    %187 = vmatpush1.msra.mxu0 0.0
    %188 = vmatprep.subr.mxu0 0.0
    %189 = vmatpush1.msra.mxu0 0.0
    %190 = vmatprep.subr.mxu0 0.0
    %191 = vmatpush1.msra.mxu0 0.0
    %192 = vmatprep.subr.mxu0 0.0
    %193 = vmatpush1.msra.mxu0 0.0
    %194 = vmatprep.subr.mxu0 0.0
    %195 = vmatpush1.msra.mxu0 0.0
    %196 = vmatprep.subr.mxu0 0.0
    %197 = vmatpush1.msra.mxu0 0.0
    %198 = vmatprep.subr.mxu0 0.0
    %199 = vmatpush1.msra.mxu0 0.0
    %200 = vmatprep.subr.mxu0 0.0
    %201 = vmatpush1.msra.mxu0 0.0
    %202 = vmatprep.subr.mxu0 0.0
    %203 = vmatpush1.msra.mxu0 0.0
    %204 = vmatprep.subr.mxu0 0.0
    %205 = vmatpush1.msra.mxu0 0.0
    %206 = vmatprep.subr.mxu0 0.0
    %207 = vmatpush1.msra.mxu0 0.0
    %208 = vmatprep.subr.mxu0 0.0
    %209 = vmatpush1.msra.mxu0 0.0
    %210 = vmatprep.subr.mxu0 0.0
    %211 = vmatpush1.msra.mxu0 0.0
    %212 = vmatprep.subr.mxu0 0.0
    %213 = vmatpush1.msra.mxu0 0.0
    %214 = vmatprep.subr.mxu0 0.0
    %215 = vmatpush1.msra.mxu0 0.0
    %216 = vmatprep.subr.mxu0 0.0
    %217 = vmatpush1.msra.mxu0 0.0
    %218 = vmatprep.subr.mxu0 0.0
    %219 = vmatpush1.msra.mxu0 0.0
    %220 = vmatprep.subr.mxu0 0.0
    %221 = vmatpush1.msra.mxu0 0.0
    %222 = vmatprep.subr.mxu0 0.0
    %223 = vmatpush1.msra.mxu0 0.0
    %224 = vmatprep.subr.mxu0 0.0
    %225 = vmatpush1.msra.mxu0 0.0
    %226 = vmatprep.subr.mxu0 0.0
    %227 = vmatpush1.msra.mxu0 0.0
    %228 = vmatprep.subr.mxu0 0.0
    %229 = vmatpush1.msra.mxu0 0.0
    %230 = vmatprep.mubr.f32.mxu0 0.0
    %231 = vmatmul.mubr.f32.gmra.mrb[0].mxu0 %v161
    %v232 = vpop.f32.mrb[0].mxu0
    %v233 = vadd.f32 %v136, %v232
    %v234 = vpop.f32.mrb[0].mxu0
    %235 = vdwg.mxu0
    %v236 = vld [vmem:[%s0 + $0x2] sm:$0x1]
    %v237 = vld [vmem:[%s0 + $0xa] sm:$0x1]
    %v238 = vld [vmem:[%s0 + $0x12] sm:$0x1]
    %v239 = vld [vmem:[%s0 + $0x1a] sm:$0x1]
    %v240 = vld [vmem:[%s0 + $0x22] sm:$0x1]
    %v241 = vld [vmem:[%s0 + $0x2a] sm:$0x1]
    %v242 = vld [vmem:[%s0 + $0x32] sm:$0x1]
    %v243 = vld [vmem:[%s0 + $0x3a] sm:$0x1]
    %s244 = scalar_lea.vmem %s1, 32
    %v245 = vld [vmem:[%s244] sm:$0xff]
    %v246 = vld [vmem:[%s244 + $0x8] sm:$0x7f]
    %v255 = vrot.slane %v237, 7
    %v256 = vsel %vm42, %v255, %v236
    %v257 = vrot.slane %v238, 6
    %v258 = vsel %vm45, %v257, %v256
    %v259 = vrot.slane %v239, 5
    %v260 = vsel %vm48, %v259, %v258
    %v261 = vrot.slane %v240, 4
    %v262 = vsel %vm51, %v261, %v260
    %v263 = vrot.slane %v241, 3
    %v264 = vsel %vm54, %v263, %v262
    %v265 = vrot.slane %v242, 2
    %v266 = vsel %vm57, %v265, %v264
    %v267 = vrot.slane %v243, 1
    %v268 = vsel %vm60, %v267, %v266
    %v269 = vsel %vm62, %v268, 0
    %v272 = vsel %vm65, %v246, 0
    %274 = vmatprep.subr.mxu0 0.0
    %275 = vmatpush1.msra.mxu0 %v245
    %276 = vmatprep.subr.mxu0 0.0
    %277 = vmatpush1.msra.mxu0 %v272
    %278 = vmatprep.subr.mxu0 0.0
    %279 = vmatpush1.msra.mxu0 0.0
    %280 = vmatprep.subr.mxu0 0.0
    %281 = vmatpush1.msra.mxu0 0.0
    %282 = vmatprep.subr.mxu0 0.0
    %283 = vmatpush1.msra.mxu0 0.0
    %284 = vmatprep.subr.mxu0 0.0
    %285 = vmatpush1.msra.mxu0 0.0
    %286 = vmatprep.subr.mxu0 0.0
    %287 = vmatpush1.msra.mxu0 0.0
    %288 = vmatprep.subr.mxu0 0.0
    %289 = vmatpush1.msra.mxu0 0.0
    %290 = vmatprep.subr.mxu0 0.0
    %291 = vmatpush1.msra.mxu0 0.0
    %292 = vmatprep.subr.mxu0 0.0
    %293 = vmatpush1.msra.mxu0 0.0
    %294 = vmatprep.subr.mxu0 0.0
    %295 = vmatpush1.msra.mxu0 0.0
    %296 = vmatprep.subr.mxu0 0.0
    %297 = vmatpush1.msra.mxu0 0.0
    %298 = vmatprep.subr.mxu0 0.0
    %299 = vmatpush1.msra.mxu0 0.0
    %300 = vmatprep.subr.mxu0 0.0
    %301 = vmatpush1.msra.mxu0 0.0
    %302 = vmatprep.subr.mxu0 0.0
    %303 = vmatpush1.msra.mxu0 0.0
    %304 = vmatprep.subr.mxu0 0.0
    %305 = vmatpush1.msra.mxu0 0.0
    %306 = vmatprep.subr.mxu0 0.0
    %307 = vmatpush1.msra.mxu0 0.0
    %308 = vmatprep.subr.mxu0 0.0
    %309 = vmatpush1.msra.mxu0 0.0
    %310 = vmatprep.subr.mxu0 0.0
    %311 = vmatpush1.msra.mxu0 0.0
    %312 = vmatprep.subr.mxu0 0.0
    %313 = vmatpush1.msra.mxu0 0.0
    %314 = vmatprep.subr.mxu0 0.0
    %315 = vmatpush1.msra.mxu0 0.0
    %316 = vmatprep.subr.mxu0 0.0
    %317 = vmatpush1.msra.mxu0 0.0
    %318 = vmatprep.subr.mxu0 0.0
    %319 = vmatpush1.msra.mxu0 0.0
    %320 = vmatprep.subr.mxu0 0.0
    %321 = vmatpush1.msra.mxu0 0.0
    %322 = vmatprep.subr.mxu0 0.0
    %323 = vmatpush1.msra.mxu0 0.0
    %324 = vmatprep.subr.mxu0 0.0
    %325 = vmatpush1.msra.mxu0 0.0
    %326 = vmatprep.subr.mxu0 0.0
    %327 = vmatpush1.msra.mxu0 0.0
    %328 = vmatprep.subr.mxu0 0.0
    %329 = vmatpush1.msra.mxu0 0.0
    %330 = vmatprep.subr.mxu0 0.0
    %331 = vmatpush1.msra.mxu0 0.0
    %332 = vmatprep.subr.mxu0 0.0
    %333 = vmatpush1.msra.mxu0 0.0
    %334 = vmatprep.subr.mxu0 0.0
    %335 = vmatpush1.msra.mxu0 0.0
    %336 = vmatprep.subr.mxu0 0.0
    %337 = vmatpush1.msra.mxu0 0.0
    %338 = vmatprep.mubr.f32.mxu0 0.0
    %339 = vmatmul.mubr.f32.gmra.mrb[0].mxu0 %v269
    %v340 = vpop.f32.mrb[0].mxu0
    %v341 = vadd.f32 0.0, %v340
    %v342 = vpop.f32.mrb[0].mxu0
    %343 = vdwg.mxu0
    %v344 = vadd.f32 %v233, %v341
    %v345 = vld [vmem:[%s0 + $0x3] sm:$0x1]
    %v346 = vld [vmem:[%s0 + $0xb] sm:$0x1]
    %v347 = vld [vmem:[%s0 + $0x13] sm:$0x1]
    %v348 = vld [vmem:[%s0 + $0x1b] sm:$0x1]
    %v349 = vld [vmem:[%s0 + $0x23] sm:$0x1]
    %v350 = vld [vmem:[%s0 + $0x2b] sm:$0x1]
    %v351 = vld [vmem:[%s0 + $0x33] sm:$0x1]
    %v352 = vld [vmem:[%s0 + $0x3b] sm:$0x1]
    %s353 = scalar_lea.vmem %s1, 48
    %v354 = vld [vmem:[%s353] sm:$0xff]
    %v355 = vld [vmem:[%s353 + $0x8] sm:$0x7f]
    %v364 = vrot.slane %v346, 7
    %v365 = vsel %vm42, %v364, %v345
    %v366 = vrot.slane %v347, 6
    %v367 = vsel %vm45, %v366, %v365
    %v368 = vrot.slane %v348, 5
    %v369 = vsel %vm48, %v368, %v367
    %v370 = vrot.slane %v349, 4
    %v371 = vsel %vm51, %v370, %v369
    %v372 = vrot.slane %v350, 3
    %v373 = vsel %vm54, %v372, %v371
    %v374 = vrot.slane %v351, 2
    %v375 = vsel %vm57, %v374, %v373
    %v376 = vrot.slane %v352, 1
    %v377 = vsel %vm60, %v376, %v375
    %v378 = vsel %vm62, %v377, 0
    %v381 = vsel %vm65, %v355, 0
    %383 = vmatprep.subr.mxu0 0.0
    %384 = vmatpush1.msra.mxu0 %v354
    %385 = vmatprep.subr.mxu0 0.0
    %386 = vmatpush1.msra.mxu0 %v381
    %387 = vmatprep.subr.mxu0 0.0
    %388 = vmatpush1.msra.mxu0 0.0
    %389 = vmatprep.subr.mxu0 0.0
    %390 = vmatpush1.msra.mxu0 0.0
    %391 = vmatprep.subr.mxu0 0.0
    %392 = vmatpush1.msra.mxu0 0.0
    %393 = vmatprep.subr.mxu0 0.0
    %394 = vmatpush1.msra.mxu0 0.0
    %395 = vmatprep.subr.mxu0 0.0
    %396 = vmatpush1.msra.mxu0 0.0
    %397 = vmatprep.subr.mxu0 0.0
    %398 = vmatpush1.msra.mxu0 0.0
    %399 = vmatprep.subr.mxu0 0.0
    %400 = vmatpush1.msra.mxu0 0.0
    %401 = vmatprep.subr.mxu0 0.0
    %402 = vmatpush1.msra.mxu0 0.0
    %403 = vmatprep.subr.mxu0 0.0
    %404 = vmatpush1.msra.mxu0 0.0
    %405 = vmatprep.subr.mxu0 0.0
    %406 = vmatpush1.msra.mxu0 0.0
    %407 = vmatprep.subr.mxu0 0.0
    %408 = vmatpush1.msra.mxu0 0.0
    %409 = vmatprep.subr.mxu0 0.0
    %410 = vmatpush1.msra.mxu0 0.0
    %411 = vmatprep.subr.mxu0 0.0
    %412 = vmatpush1.msra.mxu0 0.0
    %413 = vmatprep.subr.mxu0 0.0
    %414 = vmatpush1.msra.mxu0 0.0
    %415 = vmatprep.subr.mxu0 0.0
    %416 = vmatpush1.msra.mxu0 0.0
    %417 = vmatprep.subr.mxu0 0.0
    %418 = vmatpush1.msra.mxu0 0.0
    %419 = vmatprep.subr.mxu0 0.0
    %420 = vmatpush1.msra.mxu0 0.0
    %421 = vmatprep.subr.mxu0 0.0
    %422 = vmatpush1.msra.mxu0 0.0
    %423 = vmatprep.subr.mxu0 0.0
    %424 = vmatpush1.msra.mxu0 0.0
    %425 = vmatprep.subr.mxu0 0.0
    %426 = vmatpush1.msra.mxu0 0.0
    %427 = vmatprep.subr.mxu0 0.0
    %428 = vmatpush1.msra.mxu0 0.0
    %429 = vmatprep.subr.mxu0 0.0
    %430 = vmatpush1.msra.mxu0 0.0
    %431 = vmatprep.subr.mxu0 0.0
    %432 = vmatpush1.msra.mxu0 0.0
    %433 = vmatprep.subr.mxu0 0.0
    %434 = vmatpush1.msra.mxu0 0.0
    %435 = vmatprep.subr.mxu0 0.0
    %436 = vmatpush1.msra.mxu0 0.0
    %437 = vmatprep.subr.mxu0 0.0
    %438 = vmatpush1.msra.mxu0 0.0
    %439 = vmatprep.subr.mxu0 0.0
    %440 = vmatpush1.msra.mxu0 0.0
    %441 = vmatprep.subr.mxu0 0.0
    %442 = vmatpush1.msra.mxu0 0.0
    %443 = vmatprep.subr.mxu0 0.0
    %444 = vmatpush1.msra.mxu0 0.0
    %445 = vmatprep.subr.mxu0 0.0
    %446 = vmatpush1.msra.mxu0 0.0
    %447 = vmatprep.mubr.f32.mxu0 0.0
    %448 = vmatmul.mubr.f32.gmra.mrb[0].mxu0 %v378
    %v449 = vpop.f32.mrb[0].mxu0
    %v450 = vadd.f32 0.0, %v449
    %v451 = vpop.f32.mrb[0].mxu0
    %452 = vdwg.mxu0
    %v453 = vadd.f32 %v344, %v450
    %v454 = vld [vmem:[%s0 + $0x4] sm:$0x1]
    %v455 = vld [vmem:[%s0 + $0xc] sm:$0x1]
    %v456 = vld [vmem:[%s0 + $0x14] sm:$0x1]
    %v457 = vld [vmem:[%s0 + $0x1c] sm:$0x1]
    %v458 = vld [vmem:[%s0 + $0x24] sm:$0x1]
    %v459 = vld [vmem:[%s0 + $0x2c] sm:$0x1]
    %v460 = vld [vmem:[%s0 + $0x34] sm:$0x1]
    %v461 = vld [vmem:[%s0 + $0x3c] sm:$0x1]
    %s462 = scalar_lea.vmem %s1, 64
    %v463 = vld [vmem:[%s462] sm:$0xff]
    %v464 = vld [vmem:[%s462 + $0x8] sm:$0x7f]
    %v473 = vrot.slane %v455, 7
    %v474 = vsel %vm42, %v473, %v454
    %v475 = vrot.slane %v456, 6
    %v476 = vsel %vm45, %v475, %v474
    %v477 = vrot.slane %v457, 5
    %v478 = vsel %vm48, %v477, %v476
    %v479 = vrot.slane %v458, 4
    %v480 = vsel %vm51, %v479, %v478
    %v481 = vrot.slane %v459, 3
    %v482 = vsel %vm54, %v481, %v480
    %v483 = vrot.slane %v460, 2
    %v484 = vsel %vm57, %v483, %v482
    %v485 = vrot.slane %v461, 1
    %v486 = vsel %vm60, %v485, %v484
    %v487 = vsel %vm62, %v486, 0
    %v490 = vsel %vm65, %v464, 0
    %492 = vmatprep.subr.mxu0 0.0
    %493 = vmatpush1.msra.mxu0 %v463
    %494 = vmatprep.subr.mxu0 0.0
    %495 = vmatpush1.msra.mxu0 %v490
    %496 = vmatprep.subr.mxu0 0.0
    %497 = vmatpush1.msra.mxu0 0.0
    %498 = vmatprep.subr.mxu0 0.0
    %499 = vmatpush1.msra.mxu0 0.0
    %500 = vmatprep.subr.mxu0 0.0
    %501 = vmatpush1.msra.mxu0 0.0
    %502 = vmatprep.subr.mxu0 0.0
    %503 = vmatpush1.msra.mxu0 0.0
    %504 = vmatprep.subr.mxu0 0.0
    %505 = vmatpush1.msra.mxu0 0.0
    %506 = vmatprep.subr.mxu0 0.0
    %507 = vmatpush1.msra.mxu0 0.0
    %508 = vmatprep.subr.mxu0 0.0
    %509 = vmatpush1.msra.mxu0 0.0
    %510 = vmatprep.subr.mxu0 0.0
    %511 = vmatpush1.msra.mxu0 0.0
    %512 = vmatprep.subr.mxu0 0.0
    %513 = vmatpush1.msra.mxu0 0.0
    %514 = vmatprep.subr.mxu0 0.0
    %515 = vmatpush1.msra.mxu0 0.0
    %516 = vmatprep.subr.mxu0 0.0
    %517 = vmatpush1.msra.mxu0 0.0
    %518 = vmatprep.subr.mxu0 0.0
    %519 = vmatpush1.msra.mxu0 0.0
    %520 = vmatprep.subr.mxu0 0.0
    %521 = vmatpush1.msra.mxu0 0.0
    %522 = vmatprep.subr.mxu0 0.0
    %523 = vmatpush1.msra.mxu0 0.0
    %524 = vmatprep.subr.mxu0 0.0
    %525 = vmatpush1.msra.mxu0 0.0
    %526 = vmatprep.subr.mxu0 0.0
    %527 = vmatpush1.msra.mxu0 0.0
    %528 = vmatprep.subr.mxu0 0.0
    %529 = vmatpush1.msra.mxu0 0.0
    %530 = vmatprep.subr.mxu0 0.0
    %531 = vmatpush1.msra.mxu0 0.0
    %532 = vmatprep.subr.mxu0 0.0
    %533 = vmatpush1.msra.mxu0 0.0
    %534 = vmatprep.subr.mxu0 0.0
    %535 = vmatpush1.msra.mxu0 0.0
    %536 = vmatprep.subr.mxu0 0.0
    %537 = vmatpush1.msra.mxu0 0.0
    %538 = vmatprep.subr.mxu0 0.0
    %539 = vmatpush1.msra.mxu0 0.0
    %540 = vmatprep.subr.mxu0 0.0
    %541 = vmatpush1.msra.mxu0 0.0
    %542 = vmatprep.subr.mxu0 0.0
    %543 = vmatpush1.msra.mxu0 0.0
    %544 = vmatprep.subr.mxu0 0.0
    %545 = vmatpush1.msra.mxu0 0.0
    %546 = vmatprep.subr.mxu0 0.0
    %547 = vmatpush1.msra.mxu0 0.0
    %548 = vmatprep.subr.mxu0 0.0
    %549 = vmatpush1.msra.mxu0 0.0
    %550 = vmatprep.subr.mxu0 0.0
    %551 = vmatpush1.msra.mxu0 0.0
    %552 = vmatprep.subr.mxu0 0.0
    %553 = vmatpush1.msra.mxu0 0.0
    %554 = vmatprep.subr.mxu0 0.0
    %555 = vmatpush1.msra.mxu0 0.0
    %556 = vmatprep.mubr.f32.mxu0 0.0
    %557 = vmatmul.mubr.f32.gmra.mrb[0].mxu0 %v487
    %v558 = vpop.f32.mrb[0].mxu0
    %v559 = vadd.f32 0.0, %v558
    %v560 = vpop.f32.mrb[0].mxu0
    %561 = vdwg.mxu0
    %v562 = vadd.f32 %v453, %v559
    %v564 = vcombine.high %v562, %v562
    %v566 = vunpack.c.l.s4 1966171168
    %v567 = vunpack.c.0.s8 %v566
    %v568 = vlaneseq
    %v569 = vshrl.u32 %v568, 7
    %v570 = vsub.s32 %v567, %v569
    %v571 = vrot.slane %v562, %v570
    %v573 = vunpack.c.l.s4 1966171168
    %v574 = vunpack.c.0.s8 %v573
    %v575 = vlaneseq
    %v576 = vshrl.u32 %v575, 7
    %v577 = vsub.s32 %v574, %v576
    %v578 = vrot.slane %v564, %v577
    %v579 = vcombine.high %v571, %v571
    %v580 = vcombine.high %v578, %v578
    %v582 = vunpack.c.l.s4 1966171168
    %v583 = vunpack.c.0.s8 %v582
    %v584 = vlaneseq
    %v585 = vshrl.u32 %v584, 7
    %v586 = vsub.s32 %v583, %v585
    %v587 = vrot.slane %v571, %v586
    %v589 = vunpack.c.l.s4 1966171168
    %v590 = vunpack.c.0.s8 %v589
    %v591 = vlaneseq
    %v592 = vshrl.u32 %v591, 7
    %v593 = vsub.s32 %v590, %v592
    %v594 = vrot.slane %v578, %v593
    %v596 = vunpack.c.l.s4 1966171168
    %v597 = vunpack.c.0.s8 %v596
    %v598 = vlaneseq
    %v599 = vshrl.u32 %v598, 7
    %v600 = vsub.s32 %v597, %v599
    %v601 = vrot.slane %v579, %v600
    %v603 = vunpack.c.l.s4 1966171168
    %v604 = vunpack.c.0.s8 %v603
    %v605 = vlaneseq
    %v606 = vshrl.u32 %v605, 7
    %v607 = vsub.s32 %v604, %v606
    %v608 = vrot.slane %v580, %v607
    %v609 = vcombine.high %v587, %v587
    %v610 = vcombine.high %v594, %v594
    %v611 = vcombine.high %v601, %v601
    %v612 = vcombine.high %v608, %v608
    %621 = vst [vmem:[#allocation2] sm:$0x1] %v587
    %622 = vst [vmem:[#allocation2 + $0x4] sm:$0x1] %v601
    %623 = vst [vmem:[#allocation2 + $0x8] sm:$0x1] %v609
    %624 = vst [vmem:[#allocation2 + $0xc] sm:$0x1] %v611
    %625 = vst [vmem:[#allocation2 + $0x10] sm:$0x1] %v594
    %626 = vst [vmem:[#allocation2 + $0x14] sm:$0x1] %v608
    %627 = vst [vmem:[#allocation2 + $0x18] sm:$0x1] %v610
    %628 = vst [vmem:[#allocation2 + $0x1c] sm:$0x1] %v612
    %v629 = vld [vmem:[%s0] sm:$0x1]
    %v630 = vld [vmem:[%s0 + $0x8] sm:$0x1]
    %v631 = vld [vmem:[%s0 + $0x10] sm:$0x1]
    %v632 = vld [vmem:[%s0 + $0x18] sm:$0x1]
    %v633 = vld [vmem:[%s0 + $0x20] sm:$0x1]
    %v634 = vld [vmem:[%s0 + $0x28] sm:$0x1]
    %v635 = vld [vmem:[%s0 + $0x30] sm:$0x1]
    %v636 = vld [vmem:[%s0 + $0x38] sm:$0x1]
    %v637 = vld [vmem:[%s1] sm:$0xff]
    %v638 = vld [vmem:[%s1 + $0x8] sm:$0x7f]
    %v639 = vld [vmem:[%s0 + $0x1] sm:$0x1]
    %v640 = vld [vmem:[%s0 + $0x9] sm:$0x1]
    %v641 = vld [vmem:[%s0 + $0x11] sm:$0x1]
    %v642 = vld [vmem:[%s0 + $0x19] sm:$0x1]
    %v643 = vld [vmem:[%s0 + $0x21] sm:$0x1]
    %v644 = vld [vmem:[%s0 + $0x29] sm:$0x1]
    %v645 = vld [vmem:[%s0 + $0x31] sm:$0x1]
    %v646 = vld [vmem:[%s0 + $0x39] sm:$0x1]
    %v647 = vld [vmem:[%s30] sm:$0xff]
    %v648 = vld [vmem:[%s30 + $0x8] sm:$0x7f]
    %v657 = vrot.slane %v640, 7
    %v658 = vsel %vm42, %v657, %v639
    %v659 = vrot.slane %v641, 6
    %v660 = vsel %vm45, %v659, %v658
    %v661 = vrot.slane %v642, 5
    %v662 = vsel %vm48, %v661, %v660
    %v663 = vrot.slane %v643, 4
    %v664 = vsel %vm51, %v663, %v662
    %v665 = vrot.slane %v644, 3
    %v666 = vsel %vm54, %v665, %v664
    %v667 = vrot.slane %v645, 2
    %v668 = vsel %vm57, %v667, %v666
    %v669 = vrot.slane %v646, 1
    %v670 = vsel %vm60, %v669, %v668
    %671 = vrot.lane.b32.xlu0 %v670, 113
    %v672 = vpop.permute.xlu0 %671
    %v673 = vsel %vm62, %v672, 0
    %v676 = vsel %vm65, %v648, 0
    %678 = vmatprep.subr.mxu0 0.0
    %679 = vmatpush1.msra.mxu0 %v647
    %680 = vmatprep.subr.mxu0 0.0
    %681 = vmatpush1.msra.mxu0 %v676
    %682 = vmatprep.subr.mxu0 0.0
    %683 = vmatpush1.msra.mxu0 0.0
    %684 = vmatprep.subr.mxu0 0.0
    %685 = vmatpush1.msra.mxu0 0.0
    %686 = vmatprep.subr.mxu0 0.0
    %687 = vmatpush1.msra.mxu0 0.0
    %688 = vmatprep.subr.mxu0 0.0
    %689 = vmatpush1.msra.mxu0 0.0
    %690 = vmatprep.subr.mxu0 0.0
    %691 = vmatpush1.msra.mxu0 0.0
    %692 = vmatprep.subr.mxu0 0.0
    %693 = vmatpush1.msra.mxu0 0.0
    %694 = vmatprep.subr.mxu0 0.0
    %695 = vmatpush1.msra.mxu0 0.0
    %696 = vmatprep.subr.mxu0 0.0
    %697 = vmatpush1.msra.mxu0 0.0
    %698 = vmatprep.subr.mxu0 0.0
    %699 = vmatpush1.msra.mxu0 0.0
    %700 = vmatprep.subr.mxu0 0.0
    %701 = vmatpush1.msra.mxu0 0.0
    %702 = vmatprep.subr.mxu0 0.0
    %703 = vmatpush1.msra.mxu0 0.0
    %704 = vmatprep.subr.mxu0 0.0
    %705 = vmatpush1.msra.mxu0 0.0
    %706 = vmatprep.subr.mxu0 0.0
    %707 = vmatpush1.msra.mxu0 0.0
    %708 = vmatprep.subr.mxu0 0.0
    %709 = vmatpush1.msra.mxu0 0.0
    %710 = vmatprep.subr.mxu0 0.0
    %711 = vmatpush1.msra.mxu0 0.0
    %712 = vmatprep.subr.mxu0 0.0
    %713 = vmatpush1.msra.mxu0 0.0
    %714 = vmatprep.subr.mxu0 0.0
    %715 = vmatpush1.msra.mxu0 0.0
    %716 = vmatprep.subr.mxu0 0.0
    %717 = vmatpush1.msra.mxu0 0.0
    %718 = vmatprep.subr.mxu0 0.0
    %719 = vmatpush1.msra.mxu0 0.0
    %720 = vmatprep.subr.mxu0 0.0
    %721 = vmatpush1.msra.mxu0 0.0
    %722 = vmatprep.subr.mxu0 0.0
    %723 = vmatpush1.msra.mxu0 0.0
    %724 = vmatprep.subr.mxu0 0.0
    %725 = vmatpush1.msra.mxu0 0.0
    %726 = vmatprep.subr.mxu0 0.0
    %727 = vmatpush1.msra.mxu0 0.0
    %728 = vmatprep.subr.mxu0 0.0
    %729 = vmatpush1.msra.mxu0 0.0
    %730 = vmatprep.subr.mxu0 0.0
    %731 = vmatpush1.msra.mxu0 0.0
    %732 = vmatprep.subr.mxu0 0.0
    %733 = vmatpush1.msra.mxu0 0.0
    %734 = vmatprep.subr.mxu0 0.0
    %735 = vmatpush1.msra.mxu0 0.0
    %736 = vmatprep.subr.mxu0 0.0
    %737 = vmatpush1.msra.mxu0 0.0
    %738 = vmatprep.subr.mxu0 0.0
    %739 = vmatpush1.msra.mxu0 0.0
    %740 = vmatprep.subr.mxu0 0.0
    %741 = vmatpush1.msra.mxu0 0.0
    %742 = vmatprep.mubr.f32.mxu0 0.0
    %743 = vmatmul.mubr.f32.gmra.mrb[0].mxu0 %v673
    %v744 = vpop.f32.mrb[0].mxu0
    %v745 = vadd.f32 0.0, %v744
    %v746 = vpop.f32.mrb[0].mxu0
    %747 = vdwg.mxu0
    %v756 = vrot.slane %v630, 7
    %v757 = vsel %vm42, %v756, %v629
    %v758 = vrot.slane %v631, 6
    %v759 = vsel %vm45, %v758, %v757
    %v760 = vrot.slane %v632, 5
    %v761 = vsel %vm48, %v760, %v759
    %v762 = vrot.slane %v633, 4
    %v763 = vsel %vm51, %v762, %v761
    %v764 = vrot.slane %v634, 3
    %v765 = vsel %vm54, %v764, %v763
    %v766 = vrot.slane %v635, 2
    %v767 = vsel %vm57, %v766, %v765
    %v768 = vrot.slane %v636, 1
    %v769 = vsel %vm60, %v768, %v767
    %770 = vrot.lane.b32.xlu0 %v769, 113
    %v771 = vpop.permute.xlu0 %770
    %v772 = vsel %vm62, %v771, 0
    %v775 = vsel %vm65, %v638, 0
    %777 = vmatprep.subr.mxu0 0.0
    %778 = vmatpush1.msra.mxu0 %v637
    %779 = vmatprep.subr.mxu0 0.0
    %780 = vmatpush1.msra.mxu0 %v775
    %781 = vmatprep.subr.mxu0 0.0
    %782 = vmatpush1.msra.mxu0 0.0
    %783 = vmatprep.subr.mxu0 0.0
    %784 = vmatpush1.msra.mxu0 0.0
    %785 = vmatprep.subr.mxu0 0.0
    %786 = vmatpush1.msra.mxu0 0.0
    %787 = vmatprep.subr.mxu0 0.0
    %788 = vmatpush1.msra.mxu0 0.0
    %789 = vmatprep.subr.mxu0 0.0
    %790 = vmatpush1.msra.mxu0 0.0
    %791 = vmatprep.subr.mxu0 0.0
    %792 = vmatpush1.msra.mxu0 0.0
    %793 = vmatprep.subr.mxu0 0.0
    %794 = vmatpush1.msra.mxu0 0.0
    %795 = vmatprep.subr.mxu0 0.0
    %796 = vmatpush1.msra.mxu0 0.0
    %797 = vmatprep.subr.mxu0 0.0
    %798 = vmatpush1.msra.mxu0 0.0
    %799 = vmatprep.subr.mxu0 0.0
    %800 = vmatpush1.msra.mxu0 0.0
    %801 = vmatprep.subr.mxu0 0.0
    %802 = vmatpush1.msra.mxu0 0.0
    %803 = vmatprep.subr.mxu0 0.0
    %804 = vmatpush1.msra.mxu0 0.0
    %805 = vmatprep.subr.mxu0 0.0
    %806 = vmatpush1.msra.mxu0 0.0
    %807 = vmatprep.subr.mxu0 0.0
    %808 = vmatpush1.msra.mxu0 0.0
    %809 = vmatprep.subr.mxu0 0.0
    %810 = vmatpush1.msra.mxu0 0.0
    %811 = vmatprep.subr.mxu0 0.0
    %812 = vmatpush1.msra.mxu0 0.0
    %813 = vmatprep.subr.mxu0 0.0
    %814 = vmatpush1.msra.mxu0 0.0
    %815 = vmatprep.subr.mxu0 0.0
    %816 = vmatpush1.msra.mxu0 0.0
    %817 = vmatprep.subr.mxu0 0.0
    %818 = vmatpush1.msra.mxu0 0.0
    %819 = vmatprep.subr.mxu0 0.0
    %820 = vmatpush1.msra.mxu0 0.0
    %821 = vmatprep.subr.mxu0 0.0
    %822 = vmatpush1.msra.mxu0 0.0
    %823 = vmatprep.subr.mxu0 0.0
    %824 = vmatpush1.msra.mxu0 0.0
    %825 = vmatprep.subr.mxu0 0.0
    %826 = vmatpush1.msra.mxu0 0.0
    %827 = vmatprep.subr.mxu0 0.0
    %828 = vmatpush1.msra.mxu0 0.0
    %829 = vmatprep.subr.mxu0 0.0
    %830 = vmatpush1.msra.mxu0 0.0
    %831 = vmatprep.subr.mxu0 0.0
    %832 = vmatpush1.msra.mxu0 0.0
    %833 = vmatprep.subr.mxu0 0.0
    %834 = vmatpush1.msra.mxu0 0.0
    %835 = vmatprep.subr.mxu0 0.0
    %836 = vmatpush1.msra.mxu0 0.0
    %837 = vmatprep.subr.mxu0 0.0
    %838 = vmatpush1.msra.mxu0 0.0
    %839 = vmatprep.subr.mxu0 0.0
    %840 = vmatpush1.msra.mxu0 0.0
    %841 = vmatprep.mubr.f32.mxu0 0.0
    %842 = vmatmul.mubr.f32.gmra.mrb[0].mxu0 %v772
    %v843 = vpop.f32.mrb[0].mxu0
    %v844 = vadd.f32 %v745, %v843
    %v845 = vpop.f32.mrb[0].mxu0
    %846 = vdwg.mxu0
    %v847 = vld [vmem:[%s0 + $0x2] sm:$0x1]
    %v848 = vld [vmem:[%s0 + $0xa] sm:$0x1]
    %v849 = vld [vmem:[%s0 + $0x12] sm:$0x1]
    %v850 = vld [vmem:[%s0 + $0x1a] sm:$0x1]
    %v851 = vld [vmem:[%s0 + $0x22] sm:$0x1]
    %v852 = vld [vmem:[%s0 + $0x2a] sm:$0x1]
    %v853 = vld [vmem:[%s0 + $0x32] sm:$0x1]
    %v854 = vld [vmem:[%s0 + $0x3a] sm:$0x1]
    %v855 = vld [vmem:[%s244] sm:$0xff]
    %v856 = vld [vmem:[%s244 + $0x8] sm:$0x7f]
    %v865 = vrot.slane %v848, 7
    %v866 = vsel %vm42, %v865, %v847
    %v867 = vrot.slane %v849, 6
    %v868 = vsel %vm45, %v867, %v866
    %v869 = vrot.slane %v850, 5
    %v870 = vsel %vm48, %v869, %v868
    %v871 = vrot.slane %v851, 4
    %v872 = vsel %vm51, %v871, %v870
    %v873 = vrot.slane %v852, 3
    %v874 = vsel %vm54, %v873, %v872
    %v875 = vrot.slane %v853, 2
    %v876 = vsel %vm57, %v875, %v874
    %v877 = vrot.slane %v854, 1
    %v878 = vsel %vm60, %v877, %v876
    %879 = vrot.lane.b32.xlu0 %v878, 113
    %v880 = vpop.permute.xlu0 %879
    %v881 = vsel %vm62, %v880, 0
    %v884 = vsel %vm65, %v856, 0
    %886 = vmatprep.subr.mxu0 0.0
    %887 = vmatpush1.msra.mxu0 %v855
    %888 = vmatprep.subr.mxu0 0.0
    %889 = vmatpush1.msra.mxu0 %v884
    %890 = vmatprep.subr.mxu0 0.0
    %891 = vmatpush1.msra.mxu0 0.0
    %892 = vmatprep.subr.mxu0 0.0
    %893 = vmatpush1.msra.mxu0 0.0
    %894 = vmatprep.subr.mxu0 0.0
    %895 = vmatpush1.msra.mxu0 0.0
    %896 = vmatprep.subr.mxu0 0.0
    %897 = vmatpush1.msra.mxu0 0.0
    %898 = vmatprep.subr.mxu0 0.0
    %899 = vmatpush1.msra.mxu0 0.0
    %900 = vmatprep.subr.mxu0 0.0
    %901 = vmatpush1.msra.mxu0 0.0
    %902 = vmatprep.subr.mxu0 0.0
    %903 = vmatpush1.msra.mxu0 0.0
    %904 = vmatprep.subr.mxu0 0.0
    %905 = vmatpush1.msra.mxu0 0.0
    %906 = vmatprep.subr.mxu0 0.0
    %907 = vmatpush1.msra.mxu0 0.0
    %908 = vmatprep.subr.mxu0 0.0
    %909 = vmatpush1.msra.mxu0 0.0
    %910 = vmatprep.subr.mxu0 0.0
    %911 = vmatpush1.msra.mxu0 0.0
    %912 = vmatprep.subr.mxu0 0.0
    %913 = vmatpush1.msra.mxu0 0.0
    %914 = vmatprep.subr.mxu0 0.0
    %915 = vmatpush1.msra.mxu0 0.0
    %916 = vmatprep.subr.mxu0 0.0
    %917 = vmatpush1.msra.mxu0 0.0
    %918 = vmatprep.subr.mxu0 0.0
    %919 = vmatpush1.msra.mxu0 0.0
    %920 = vmatprep.subr.mxu0 0.0
    %921 = vmatpush1.msra.mxu0 0.0
    %922 = vmatprep.subr.mxu0 0.0
    %923 = vmatpush1.msra.mxu0 0.0
    %924 = vmatprep.subr.mxu0 0.0
    %925 = vmatpush1.msra.mxu0 0.0
    %926 = vmatprep.subr.mxu0 0.0
    %927 = vmatpush1.msra.mxu0 0.0
    %928 = vmatprep.subr.mxu0 0.0
    %929 = vmatpush1.msra.mxu0 0.0
    %930 = vmatprep.subr.mxu0 0.0
    %931 = vmatpush1.msra.mxu0 0.0
    %932 = vmatprep.subr.mxu0 0.0
    %933 = vmatpush1.msra.mxu0 0.0
    %934 = vmatprep.subr.mxu0 0.0
    %935 = vmatpush1.msra.mxu0 0.0
    %936 = vmatprep.subr.mxu0 0.0
    %937 = vmatpush1.msra.mxu0 0.0
    %938 = vmatprep.subr.mxu0 0.0
    %939 = vmatpush1.msra.mxu0 0.0
    %940 = vmatprep.subr.mxu0 0.0
    %941 = vmatpush1.msra.mxu0 0.0
    %942 = vmatprep.subr.mxu0 0.0
    %943 = vmatpush1.msra.mxu0 0.0
    %944 = vmatprep.subr.mxu0 0.0
    %945 = vmatpush1.msra.mxu0 0.0
    %946 = vmatprep.subr.mxu0 0.0
    %947 = vmatpush1.msra.mxu0 0.0
    %948 = vmatprep.subr.mxu0 0.0
    %949 = vmatpush1.msra.mxu0 0.0
    %950 = vmatprep.mubr.f32.mxu0 0.0
    %951 = vmatmul.mubr.f32.gmra.mrb[0].mxu0 %v881
    %v952 = vpop.f32.mrb[0].mxu0
    %v953 = vadd.f32 0.0, %v952
    %v954 = vpop.f32.mrb[0].mxu0
    %955 = vdwg.mxu0
    %v956 = vadd.f32 %v844, %v953
    %v957 = vld [vmem:[%s0 + $0x3] sm:$0x1]
    %v958 = vld [vmem:[%s0 + $0xb] sm:$0x1]
    %v959 = vld [vmem:[%s0 + $0x13] sm:$0x1]
    %v960 = vld [vmem:[%s0 + $0x1b] sm:$0x1]
    %v961 = vld [vmem:[%s0 + $0x23] sm:$0x1]
    %v962 = vld [vmem:[%s0 + $0x2b] sm:$0x1]
    %v963 = vld [vmem:[%s0 + $0x33] sm:$0x1]
    %v964 = vld [vmem:[%s0 + $0x3b] sm:$0x1]
    %v965 = vld [vmem:[%s353] sm:$0xff]
    %v966 = vld [vmem:[%s353 + $0x8] sm:$0x7f]
    %v975 = vrot.slane %v958, 7
    %v976 = vsel %vm42, %v975, %v957
    %v977 = vrot.slane %v959, 6
    %v978 = vsel %vm45, %v977, %v976
    %v979 = vrot.slane %v960, 5
    %v980 = vsel %vm48, %v979, %v978
    %v981 = vrot.slane %v961, 4
    %v982 = vsel %vm51, %v981, %v980
    %v983 = vrot.slane %v962, 3
    %v984 = vsel %vm54, %v983, %v982
    %v985 = vrot.slane %v963, 2
    %v986 = vsel %vm57, %v985, %v984
    %v987 = vrot.slane %v964, 1
    %v988 = vsel %vm60, %v987, %v986
    %989 = vrot.lane.b32.xlu0 %v988, 113
    %v990 = vpop.permute.xlu0 %989
    %v991 = vsel %vm62, %v990, 0
    %v994 = vsel %vm65, %v966, 0
    %996 = vmatprep.subr.mxu0 0.0
    %997 = vmatpush1.msra.mxu0 %v965
    %998 = vmatprep.subr.mxu0 0.0
    %999 = vmatpush1.msra.mxu0 %v994
    %1000 = vmatprep.subr.mxu0 0.0
    %1001 = vmatpush1.msra.mxu0 0.0
    %1002 = vmatprep.subr.mxu0 0.0
    %1003 = vmatpush1.msra.mxu0 0.0
    %1004 = vmatprep.subr.mxu0 0.0
    %1005 = vmatpush1.msra.mxu0 0.0
    %1006 = vmatprep.subr.mxu0 0.0
    %1007 = vmatpush1.msra.mxu0 0.0
    %1008 = vmatprep.subr.mxu0 0.0
    %1009 = vmatpush1.msra.mxu0 0.0
    %1010 = vmatprep.subr.mxu0 0.0
    %1011 = vmatpush1.msra.mxu0 0.0
    %1012 = vmatprep.subr.mxu0 0.0
    %1013 = vmatpush1.msra.mxu0 0.0
    %1014 = vmatprep.subr.mxu0 0.0
    %1015 = vmatpush1.msra.mxu0 0.0
    %1016 = vmatprep.subr.mxu0 0.0
    %1017 = vmatpush1.msra.mxu0 0.0
    %1018 = vmatprep.subr.mxu0 0.0
    %1019 = vmatpush1.msra.mxu0 0.0
    %1020 = vmatprep.subr.mxu0 0.0
    %1021 = vmatpush1.msra.mxu0 0.0
    %1022 = vmatprep.subr.mxu0 0.0
    %1023 = vmatpush1.msra.mxu0 0.0
    %1024 = vmatprep.subr.mxu0 0.0
    %1025 = vmatpush1.msra.mxu0 0.0
    %1026 = vmatprep.subr.mxu0 0.0
    %1027 = vmatpush1.msra.mxu0 0.0
    %1028 = vmatprep.subr.mxu0 0.0
    %1029 = vmatpush1.msra.mxu0 0.0
    %1030 = vmatprep.subr.mxu0 0.0
    %1031 = vmatpush1.msra.mxu0 0.0
    %1032 = vmatprep.subr.mxu0 0.0
    %1033 = vmatpush1.msra.mxu0 0.0
    %1034 = vmatprep.subr.mxu0 0.0
    %1035 = vmatpush1.msra.mxu0 0.0
    %1036 = vmatprep.subr.mxu0 0.0
    %1037 = vmatpush1.msra.mxu0 0.0
    %1038 = vmatprep.subr.mxu0 0.0
    %1039 = vmatpush1.msra.mxu0 0.0
    %1040 = vmatprep.subr.mxu0 0.0
    %1041 = vmatpush1.msra.mxu0 0.0
    %1042 = vmatprep.subr.mxu0 0.0
    %1043 = vmatpush1.msra.mxu0 0.0
    %1044 = vmatprep.subr.mxu0 0.0
    %1045 = vmatpush1.msra.mxu0 0.0
    %1046 = vmatprep.subr.mxu0 0.0
    %1047 = vmatpush1.msra.mxu0 0.0
    %1048 = vmatprep.subr.mxu0 0.0
    %1049 = vmatpush1.msra.mxu0 0.0
    %1050 = vmatprep.subr.mxu0 0.0
    %1051 = vmatpush1.msra.mxu0 0.0
    %1052 = vmatprep.subr.mxu0 0.0
    %1053 = vmatpush1.msra.mxu0 0.0
    %1054 = vmatprep.subr.mxu0 0.0
    %1055 = vmatpush1.msra.mxu0 0.0
    %1056 = vmatprep.subr.mxu0 0.0
    %1057 = vmatpush1.msra.mxu0 0.0
    %1058 = vmatprep.subr.mxu0 0.0
    %1059 = vmatpush1.msra.mxu0 0.0
    %1060 = vmatprep.mubr.f32.mxu0 0.0
    %1061 = vmatmul.mubr.f32.gmra.mrb[0].mxu0 %v991
    %v1062 = vpop.f32.mrb[0].mxu0
    %v1063 = vadd.f32 0.0, %v1062
    %v1064 = vpop.f32.mrb[0].mxu0
    %1065 = vdwg.mxu0
    %v1066 = vadd.f32 %v956, %v1063
    %v1067 = vld [vmem:[%s0 + $0x4] sm:$0x1]
    %v1068 = vld [vmem:[%s0 + $0xc] sm:$0x1]
    %v1069 = vld [vmem:[%s0 + $0x14] sm:$0x1]
    %v1070 = vld [vmem:[%s0 + $0x1c] sm:$0x1]
    %v1071 = vld [vmem:[%s0 + $0x24] sm:$0x1]
    %v1072 = vld [vmem:[%s0 + $0x2c] sm:$0x1]
    %v1073 = vld [vmem:[%s0 + $0x34] sm:$0x1]
    %v1074 = vld [vmem:[%s0 + $0x3c] sm:$0x1]
    %v1075 = vld [vmem:[%s462] sm:$0xff]
    %v1076 = vld [vmem:[%s462 + $0x8] sm:$0x7f]
    %v1085 = vrot.slane %v1068, 7
    %v1086 = vsel %vm42, %v1085, %v1067
    %v1087 = vrot.slane %v1069, 6
    %v1088 = vsel %vm45, %v1087, %v1086
    %v1089 = vrot.slane %v1070, 5
    %v1090 = vsel %vm48, %v1089, %v1088
    %v1091 = vrot.slane %v1071, 4
    %v1092 = vsel %vm51, %v1091, %v1090
    %v1093 = vrot.slane %v1072, 3
    %v1094 = vsel %vm54, %v1093, %v1092
    %v1095 = vrot.slane %v1073, 2
    %v1096 = vsel %vm57, %v1095, %v1094
    %v1097 = vrot.slane %v1074, 1
    %v1098 = vsel %vm60, %v1097, %v1096
    %1099 = vrot.lane.b32.xlu0 %v1098, 113
    %v1100 = vpop.permute.xlu0 %1099
    %v1101 = vsel %vm62, %v1100, 0
    %v1104 = vsel %vm65, %v1076, 0
    %1106 = vmatprep.subr.mxu0 0.0
    %1107 = vmatpush1.msra.mxu0 %v1075
    %1108 = vmatprep.subr.mxu0 0.0
    %1109 = vmatpush1.msra.mxu0 %v1104
    %1110 = vmatprep.subr.mxu0 0.0
    %1111 = vmatpush1.msra.mxu0 0.0
    %1112 = vmatprep.subr.mxu0 0.0
    %1113 = vmatpush1.msra.mxu0 0.0
    %1114 = vmatprep.subr.mxu0 0.0
    %1115 = vmatpush1.msra.mxu0 0.0
    %1116 = vmatprep.subr.mxu0 0.0
    %1117 = vmatpush1.msra.mxu0 0.0
    %1118 = vmatprep.subr.mxu0 0.0
    %1119 = vmatpush1.msra.mxu0 0.0
    %1120 = vmatprep.subr.mxu0 0.0
    %1121 = vmatpush1.msra.mxu0 0.0
    %1122 = vmatprep.subr.mxu0 0.0
    %1123 = vmatpush1.msra.mxu0 0.0
    %1124 = vmatprep.subr.mxu0 0.0
    %1125 = vmatpush1.msra.mxu0 0.0
    %1126 = vmatprep.subr.mxu0 0.0
    %1127 = vmatpush1.msra.mxu0 0.0
    %1128 = vmatprep.subr.mxu0 0.0
    %1129 = vmatpush1.msra.mxu0 0.0
    %1130 = vmatprep.subr.mxu0 0.0
    %1131 = vmatpush1.msra.mxu0 0.0
    %1132 = vmatprep.subr.mxu0 0.0
    %1133 = vmatpush1.msra.mxu0 0.0
    %1134 = vmatprep.subr.mxu0 0.0
    %1135 = vmatpush1.msra.mxu0 0.0
    %1136 = vmatprep.subr.mxu0 0.0
    %1137 = vmatpush1.msra.mxu0 0.0
    %1138 = vmatprep.subr.mxu0 0.0
    %1139 = vmatpush1.msra.mxu0 0.0
    %1140 = vmatprep.subr.mxu0 0.0
    %1141 = vmatpush1.msra.mxu0 0.0
    %1142 = vmatprep.subr.mxu0 0.0
    %1143 = vmatpush1.msra.mxu0 0.0
    %1144 = vmatprep.subr.mxu0 0.0
    %1145 = vmatpush1.msra.mxu0 0.0
    %1146 = vmatprep.subr.mxu0 0.0
    %1147 = vmatpush1.msra.mxu0 0.0
    %1148 = vmatprep.subr.mxu0 0.0
    %1149 = vmatpush1.msra.mxu0 0.0
    %1150 = vmatprep.subr.mxu0 0.0
    %1151 = vmatpush1.msra.mxu0 0.0
    %1152 = vmatprep.subr.mxu0 0.0
    %1153 = vmatpush1.msra.mxu0 0.0
    %1154 = vmatprep.subr.mxu0 0.0
    %1155 = vmatpush1.msra.mxu0 0.0
    %1156 = vmatprep.subr.mxu0 0.0
    %1157 = vmatpush1.msra.mxu0 0.0
    %1158 = vmatprep.subr.mxu0 0.0
    %1159 = vmatpush1.msra.mxu0 0.0
    %1160 = vmatprep.subr.mxu0 0.0
    %1161 = vmatpush1.msra.mxu0 0.0
    %1162 = vmatprep.subr.mxu0 0.0
    %1163 = vmatpush1.msra.mxu0 0.0
    %1164 = vmatprep.subr.mxu0 0.0
    %1165 = vmatpush1.msra.mxu0 0.0
    %1166 = vmatprep.subr.mxu0 0.0
    %1167 = vmatpush1.msra.mxu0 0.0
    %1168 = vmatprep.subr.mxu0 0.0
    %1169 = vmatpush1.msra.mxu0 0.0
    %1170 = vmatprep.mubr.f32.mxu0 0.0
    %1171 = vmatmul.mubr.f32.gmra.mrb[0].mxu0 %v1101
    %v1172 = vpop.f32.mrb[0].mxu0
    %v1173 = vadd.f32 0.0, %v1172
    %v1174 = vpop.f32.mrb[0].mxu0
    %1175 = vdwg.mxu0
    %v1176 = vadd.f32 %v1066, %v1173
    %v1178 = vcombine.high %v1176, %v1176
    %v1180 = vunpack.c.l.s4 1966171168
    %v1181 = vunpack.c.0.s8 %v1180
    %v1182 = vlaneseq
    %v1183 = vshrl.u32 %v1182, 7
    %v1184 = vsub.s32 %v1181, %v1183
    %v1185 = vrot.slane %v1176, %v1184
    %v1187 = vunpack.c.l.s4 1966171168
    %v1188 = vunpack.c.0.s8 %v1187
    %v1189 = vlaneseq
    %v1190 = vshrl.u32 %v1189, 7
    %v1191 = vsub.s32 %v1188, %v1190
    %v1192 = vrot.slane %v1178, %v1191
    %v1193 = vcombine.high %v1185, %v1185
    %v1194 = vcombine.high %v1192, %v1192
    %v1196 = vunpack.c.l.s4 1966171168
    %v1197 = vunpack.c.0.s8 %v1196
    %v1198 = vlaneseq
    %v1199 = vshrl.u32 %v1198, 7
    %v1200 = vsub.s32 %v1197, %v1199
    %v1201 = vrot.slane %v1185, %v1200
    %v1203 = vunpack.c.l.s4 1966171168
    %v1204 = vunpack.c.0.s8 %v1203
    %v1205 = vlaneseq
    %v1206 = vshrl.u32 %v1205, 7
    %v1207 = vsub.s32 %v1204, %v1206
    %v1208 = vrot.slane %v1192, %v1207
    %v1210 = vunpack.c.l.s4 1966171168
    %v1211 = vunpack.c.0.s8 %v1210
    %v1212 = vlaneseq
    %v1213 = vshrl.u32 %v1212, 7
    %v1214 = vsub.s32 %v1211, %v1213
    %v1215 = vrot.slane %v1193, %v1214
    %v1217 = vunpack.c.l.s4 1966171168
    %v1218 = vunpack.c.0.s8 %v1217
    %v1219 = vlaneseq
    %v1220 = vshrl.u32 %v1219, 7
    %v1221 = vsub.s32 %v1218, %v1220
    %v1222 = vrot.slane %v1194, %v1221
    %v1223 = vcombine.high %v1201, %v1201
    %v1224 = vcombine.high %v1208, %v1208
    %v1225 = vcombine.high %v1215, %v1215
    %v1226 = vcombine.high %v1222, %v1222
    %1235 = vst [vmem:[#allocation2 + $0x1] sm:$0x1] %v1201
    %1236 = vst [vmem:[#allocation2 + $0x5] sm:$0x1] %v1215
    %1237 = vst [vmem:[#allocation2 + $0x9] sm:$0x1] %v1223
    %1238 = vst [vmem:[#allocation2 + $0xd] sm:$0x1] %v1225
    %1239 = vst [vmem:[#allocation2 + $0x11] sm:$0x1] %v1208
    %1240 = vst [vmem:[#allocation2 + $0x15] sm:$0x1] %v1222
    %1241 = vst [vmem:[#allocation2 + $0x19] sm:$0x1] %v1224
    %1242 = vst [vmem:[#allocation2 + $0x1d] sm:$0x1] %v1226
    %v1243 = vld [vmem:[%s0] sm:$0x1]
    %v1244 = vld [vmem:[%s0 + $0x8] sm:$0x1]
    %v1245 = vld [vmem:[%s0 + $0x10] sm:$0x1]
    %v1246 = vld [vmem:[%s0 + $0x18] sm:$0x1]
    %v1247 = vld [vmem:[%s0 + $0x20] sm:$0x1]
    %v1248 = vld [vmem:[%s0 + $0x28] sm:$0x1]
    %v1249 = vld [vmem:[%s0 + $0x30] sm:$0x1]
    %v1250 = vld [vmem:[%s0 + $0x38] sm:$0x1]
    %v1251 = vld [vmem:[%s1] sm:$0xff]
    %v1252 = vld [vmem:[%s1 + $0x8] sm:$0x7f]
    %v1253 = vld [vmem:[%s0 + $0x1] sm:$0x1]
    %v1254 = vld [vmem:[%s0 + $0x9] sm:$0x1]
    %v1255 = vld [vmem:[%s0 + $0x11] sm:$0x1]
    %v1256 = vld [vmem:[%s0 + $0x19] sm:$0x1]
    %v1257 = vld [vmem:[%s0 + $0x21] sm:$0x1]
    %v1258 = vld [vmem:[%s0 + $0x29] sm:$0x1]
    %v1259 = vld [vmem:[%s0 + $0x31] sm:$0x1]
    %v1260 = vld [vmem:[%s0 + $0x39] sm:$0x1]
    %v1261 = vld [vmem:[%s30] sm:$0xff]
    %v1262 = vld [vmem:[%s30 + $0x8] sm:$0x7f]
    %v1271 = vrot.slane %v1254, 7
    %v1272 = vsel %vm42, %v1271, %v1253
    %v1273 = vrot.slane %v1255, 6
    %v1274 = vsel %vm45, %v1273, %v1272
    %v1275 = vrot.slane %v1256, 5
    %v1276 = vsel %vm48, %v1275, %v1274
    %v1277 = vrot.slane %v1257, 4
    %v1278 = vsel %vm51, %v1277, %v1276
    %v1279 = vrot.slane %v1258, 3
    %v1280 = vsel %vm54, %v1279, %v1278
    %v1281 = vrot.slane %v1259, 2
    %v1282 = vsel %vm57, %v1281, %v1280
    %v1283 = vrot.slane %v1260, 1
    %v1284 = vsel %vm60, %v1283, %v1282
    %1285 = vrot.lane.b32.xlu0 %v1284, 98
    %v1286 = vpop.permute.xlu0 %1285
    %v1287 = vsel %vm62, %v1286, 0
    %v1290 = vsel %vm65, %v1262, 0
    %1292 = vmatprep.subr.mxu0 0.0
    %1293 = vmatpush1.msra.mxu0 %v1261
    %1294 = vmatprep.subr.mxu0 0.0
    %1295 = vmatpush1.msra.mxu0 %v1290
    %1296 = vmatprep.subr.mxu0 0.0
    %1297 = vmatpush1.msra.mxu0 0.0
    %1298 = vmatprep.subr.mxu0 0.0
    %1299 = vmatpush1.msra.mxu0 0.0
    %1300 = vmatprep.subr.mxu0 0.0
    %1301 = vmatpush1.msra.mxu0 0.0
    %1302 = vmatprep.subr.mxu0 0.0
    %1303 = vmatpush1.msra.mxu0 0.0
    %1304 = vmatprep.subr.mxu0 0.0
    %1305 = vmatpush1.msra.mxu0 0.0
    %1306 = vmatprep.subr.mxu0 0.0
    %1307 = vmatpush1.msra.mxu0 0.0
    %1308 = vmatprep.subr.mxu0 0.0
    %1309 = vmatpush1.msra.mxu0 0.0
    %1310 = vmatprep.subr.mxu0 0.0
    %1311 = vmatpush1.msra.mxu0 0.0
    %1312 = vmatprep.subr.mxu0 0.0
    %1313 = vmatpush1.msra.mxu0 0.0
    %1314 = vmatprep.subr.mxu0 0.0
    %1315 = vmatpush1.msra.mxu0 0.0
    %1316 = vmatprep.subr.mxu0 0.0
    %1317 = vmatpush1.msra.mxu0 0.0
    %1318 = vmatprep.subr.mxu0 0.0
    %1319 = vmatpush1.msra.mxu0 0.0
    %1320 = vmatprep.subr.mxu0 0.0
    %1321 = vmatpush1.msra.mxu0 0.0
    %1322 = vmatprep.subr.mxu0 0.0
    %1323 = vmatpush1.msra.mxu0 0.0
    %1324 = vmatprep.subr.mxu0 0.0
    %1325 = vmatpush1.msra.mxu0 0.0
    %1326 = vmatprep.subr.mxu0 0.0
    %1327 = vmatpush1.msra.mxu0 0.0
    %1328 = vmatprep.subr.mxu0 0.0
    %1329 = vmatpush1.msra.mxu0 0.0
    %1330 = vmatprep.subr.mxu0 0.0
    %1331 = vmatpush1.msra.mxu0 0.0
    %1332 = vmatprep.subr.mxu0 0.0
    %1333 = vmatpush1.msra.mxu0 0.0
    %1334 = vmatprep.subr.mxu0 0.0
    %1335 = vmatpush1.msra.mxu0 0.0
    %1336 = vmatprep.subr.mxu0 0.0
    %1337 = vmatpush1.msra.mxu0 0.0
    %1338 = vmatprep.subr.mxu0 0.0
    %1339 = vmatpush1.msra.mxu0 0.0
    %1340 = vmatprep.subr.mxu0 0.0
    %1341 = vmatpush1.msra.mxu0 0.0
    %1342 = vmatprep.subr.mxu0 0.0
    %1343 = vmatpush1.msra.mxu0 0.0
    %1344 = vmatprep.subr.mxu0 0.0
    %1345 = vmatpush1.msra.mxu0 0.0
    %1346 = vmatprep.subr.mxu0 0.0
    %1347 = vmatpush1.msra.mxu0 0.0
    %1348 = vmatprep.subr.mxu0 0.0
    %1349 = vmatpush1.msra.mxu0 0.0
    %1350 = vmatprep.subr.mxu0 0.0
    %1351 = vmatpush1.msra.mxu0 0.0
    %1352 = vmatprep.subr.mxu0 0.0
    %1353 = vmatpush1.msra.mxu0 0.0
    %1354 = vmatprep.subr.mxu0 0.0
    %1355 = vmatpush1.msra.mxu0 0.0
    %1356 = vmatprep.mubr.f32.mxu0 0.0
    %1357 = vmatmul.mubr.f32.gmra.mrb[0].mxu0 %v1287
    %v1358 = vpop.f32.mrb[0].mxu0
    %v1359 = vadd.f32 0.0, %v1358
    %v1360 = vpop.f32.mrb[0].mxu0
    %1361 = vdwg.mxu0
    %v1370 = vrot.slane %v1244, 7
    %v1371 = vsel %vm42, %v1370, %v1243
    %v1372 = vrot.slane %v1245, 6
    %v1373 = vsel %vm45, %v1372, %v1371
    %v1374 = vrot.slane %v1246, 5
    %v1375 = vsel %vm48, %v1374, %v1373
    %v1376 = vrot.slane %v1247, 4
    %v1377 = vsel %vm51, %v1376, %v1375
    %v1378 = vrot.slane %v1248, 3
    %v1379 = vsel %vm54, %v1378, %v1377
    %v1380 = vrot.slane %v1249, 2
    %v1381 = vsel %vm57, %v1380, %v1379
    %v1382 = vrot.slane %v1250, 1
    %v1383 = vsel %vm60, %v1382, %v1381
    %1384 = vrot.lane.b32.xlu0 %v1383, 98
    %v1385 = vpop.permute.xlu0 %1384
    %v1386 = vsel %vm62, %v1385, 0
    %v1389 = vsel %vm65, %v1252, 0
    %1391 = vmatprep.subr.mxu0 0.0
    %1392 = vmatpush1.msra.mxu0 %v1251
    %1393 = vmatprep.subr.mxu0 0.0
    %1394 = vmatpush1.msra.mxu0 %v1389
    %1395 = vmatprep.subr.mxu0 0.0
    %1396 = vmatpush1.msra.mxu0 0.0
    %1397 = vmatprep.subr.mxu0 0.0
    %1398 = vmatpush1.msra.mxu0 0.0
    %1399 = vmatprep.subr.mxu0 0.0
    %1400 = vmatpush1.msra.mxu0 0.0
    %1401 = vmatprep.subr.mxu0 0.0
    %1402 = vmatpush1.msra.mxu0 0.0
    %1403 = vmatprep.subr.mxu0 0.0
    %1404 = vmatpush1.msra.mxu0 0.0
    %1405 = vmatprep.subr.mxu0 0.0
    %1406 = vmatpush1.msra.mxu0 0.0
    %1407 = vmatprep.subr.mxu0 0.0
    %1408 = vmatpush1.msra.mxu0 0.0
    %1409 = vmatprep.subr.mxu0 0.0
    %1410 = vmatpush1.msra.mxu0 0.0
    %1411 = vmatprep.subr.mxu0 0.0
    %1412 = vmatpush1.msra.mxu0 0.0
    %1413 = vmatprep.subr.mxu0 0.0
    %1414 = vmatpush1.msra.mxu0 0.0
    %1415 = vmatprep.subr.mxu0 0.0
    %1416 = vmatpush1.msra.mxu0 0.0
    %1417 = vmatprep.subr.mxu0 0.0
    %1418 = vmatpush1.msra.mxu0 0.0
    %1419 = vmatprep.subr.mxu0 0.0
    %1420 = vmatpush1.msra.mxu0 0.0
    %1421 = vmatprep.subr.mxu0 0.0
    %1422 = vmatpush1.msra.mxu0 0.0
    %1423 = vmatprep.subr.mxu0 0.0
    %1424 = vmatpush1.msra.mxu0 0.0
    %1425 = vmatprep.subr.mxu0 0.0
    %1426 = vmatpush1.msra.mxu0 0.0
    %1427 = vmatprep.subr.mxu0 0.0
    %1428 = vmatpush1.msra.mxu0 0.0
    %1429 = vmatprep.subr.mxu0 0.0
    %1430 = vmatpush1.msra.mxu0 0.0
    %1431 = vmatprep.subr.mxu0 0.0
    %1432 = vmatpush1.msra.mxu0 0.0
    %1433 = vmatprep.subr.mxu0 0.0
    %1434 = vmatpush1.msra.mxu0 0.0
    %1435 = vmatprep.subr.mxu0 0.0
    %1436 = vmatpush1.msra.mxu0 0.0
    %1437 = vmatprep.subr.mxu0 0.0
    %1438 = vmatpush1.msra.mxu0 0.0
    %1439 = vmatprep.subr.mxu0 0.0
    %1440 = vmatpush1.msra.mxu0 0.0
    %1441 = vmatprep.subr.mxu0 0.0
    %1442 = vmatpush1.msra.mxu0 0.0
    %1443 = vmatprep.subr.mxu0 0.0
    %1444 = vmatpush1.msra.mxu0 0.0
    %1445 = vmatprep.subr.mxu0 0.0
    %1446 = vmatpush1.msra.mxu0 0.0
    %1447 = vmatprep.subr.mxu0 0.0
    %1448 = vmatpush1.msra.mxu0 0.0
    %1449 = vmatprep.subr.mxu0 0.0
    %1450 = vmatpush1.msra.mxu0 0.0
    %1451 = vmatprep.subr.mxu0 0.0
    %1452 = vmatpush1.msra.mxu0 0.0
    %1453 = vmatprep.subr.mxu0 0.0
    %1454 = vmatpush1.msra.mxu0 0.0
    %1455 = vmatprep.mubr.f32.mxu0 0.0
    %1456 = vmatmul.mubr.f32.gmra.mrb[0].mxu0 %v1386
    %v1457 = vpop.f32.mrb[0].mxu0
    %v1458 = vadd.f32 %v1359, %v1457
    %v1459 = vpop.f32.mrb[0].mxu0
    %1460 = vdwg.mxu0
    %v1461 = vld [vmem:[%s0 + $0x2] sm:$0x1]
    %v1462 = vld [vmem:[%s0 + $0xa] sm:$0x1]
    %v1463 = vld [vmem:[%s0 + $0x12] sm:$0x1]
    %v1464 = vld [vmem:[%s0 + $0x1a] sm:$0x1]
    %v1465 = vld [vmem:[%s0 + $0x22] sm:$0x1]
    %v1466 = vld [vmem:[%s0 + $0x2a] sm:$0x1]
    %v1467 = vld [vmem:[%s0 + $0x32] sm:$0x1]
    %v1468 = vld [vmem:[%s0 + $0x3a] sm:$0x1]
    %v1469 = vld [vmem:[%s244] sm:$0xff]
    %v1470 = vld [vmem:[%s244 + $0x8] sm:$0x7f]
    %v1479 = vrot.slane %v1462, 7
    %v1480 = vsel %vm42, %v1479, %v1461
    %v1481 = vrot.slane %v1463, 6
    %v1482 = vsel %vm45, %v1481, %v1480
    %v1483 = vrot.slane %v1464, 5
    %v1484 = vsel %vm48, %v1483, %v1482
    %v1485 = vrot.slane %v1465, 4
    %v1486 = vsel %vm51, %v1485, %v1484
    %v1487 = vrot.slane %v1466, 3
    %v1488 = vsel %vm54, %v1487, %v1486
    %v1489 = vrot.slane %v1467, 2
    %v1490 = vsel %vm57, %v1489, %v1488
    %v1491 = vrot.slane %v1468, 1
    %v1492 = vsel %vm60, %v1491, %v1490
    %1493 = vrot.lane.b32.xlu0 %v1492, 98
    %v1494 = vpop.permute.xlu0 %1493
    %v1495 = vsel %vm62, %v1494, 0
    %v1498 = vsel %vm65, %v1470, 0
    %1500 = vmatprep.subr.mxu0 0.0
    %1501 = vmatpush1.msra.mxu0 %v1469
    %1502 = vmatprep.subr.mxu0 0.0
    %1503 = vmatpush1.msra.mxu0 %v1498
    %1504 = vmatprep.subr.mxu0 0.0
    %1505 = vmatpush1.msra.mxu0 0.0
    %1506 = vmatprep.subr.mxu0 0.0
    %1507 = vmatpush1.msra.mxu0 0.0
    %1508 = vmatprep.subr.mxu0 0.0
    %1509 = vmatpush1.msra.mxu0 0.0
    %1510 = vmatprep.subr.mxu0 0.0
    %1511 = vmatpush1.msra.mxu0 0.0
    %1512 = vmatprep.subr.mxu0 0.0
    %1513 = vmatpush1.msra.mxu0 0.0
    %1514 = vmatprep.subr.mxu0 0.0
    %1515 = vmatpush1.msra.mxu0 0.0
    %1516 = vmatprep.subr.mxu0 0.0
    %1517 = vmatpush1.msra.mxu0 0.0
    %1518 = vmatprep.subr.mxu0 0.0
    %1519 = vmatpush1.msra.mxu0 0.0
    %1520 = vmatprep.subr.mxu0 0.0
    %1521 = vmatpush1.msra.mxu0 0.0
    %1522 = vmatprep.subr.mxu0 0.0
    %1523 = vmatpush1.msra.mxu0 0.0
    %1524 = vmatprep.subr.mxu0 0.0
    %1525 = vmatpush1.msra.mxu0 0.0
    %1526 = vmatprep.subr.mxu0 0.0
    %1527 = vmatpush1.msra.mxu0 0.0
    %1528 = vmatprep.subr.mxu0 0.0
    %1529 = vmatpush1.msra.mxu0 0.0
    %1530 = vmatprep.subr.mxu0 0.0
    %1531 = vmatpush1.msra.mxu0 0.0
    %1532 = vmatprep.subr.mxu0 0.0
    %1533 = vmatpush1.msra.mxu0 0.0
    %1534 = vmatprep.subr.mxu0 0.0
    %1535 = vmatpush1.msra.mxu0 0.0
    %1536 = vmatprep.subr.mxu0 0.0
    %1537 = vmatpush1.msra.mxu0 0.0
    %1538 = vmatprep.subr.mxu0 0.0
    %1539 = vmatpush1.msra.mxu0 0.0
    %1540 = vmatprep.subr.mxu0 0.0
    %1541 = vmatpush1.msra.mxu0 0.0
    %1542 = vmatprep.subr.mxu0 0.0
    %1543 = vmatpush1.msra.mxu0 0.0
    %1544 = vmatprep.subr.mxu0 0.0
    %1545 = vmatpush1.msra.mxu0 0.0
    %1546 = vmatprep.subr.mxu0 0.0
    %1547 = vmatpush1.msra.mxu0 0.0
    %1548 = vmatprep.subr.mxu0 0.0
    %1549 = vmatpush1.msra.mxu0 0.0
    %1550 = vmatprep.subr.mxu0 0.0
    %1551 = vmatpush1.msra.mxu0 0.0
    %1552 = vmatprep.subr.mxu0 0.0
    %1553 = vmatpush1.msra.mxu0 0.0
    %1554 = vmatprep.subr.mxu0 0.0
    %1555 = vmatpush1.msra.mxu0 0.0
    %1556 = vmatprep.subr.mxu0 0.0
    %1557 = vmatpush1.msra.mxu0 0.0
    %1558 = vmatprep.subr.mxu0 0.0
    %1559 = vmatpush1.msra.mxu0 0.0
    %1560 = vmatprep.subr.mxu0 0.0
    %1561 = vmatpush1.msra.mxu0 0.0
    %1562 = vmatprep.subr.mxu0 0.0
    %1563 = vmatpush1.msra.mxu0 0.0
    %1564 = vmatprep.mubr.f32.mxu0 0.0
    %1565 = vmatmul.mubr.f32.gmra.mrb[0].mxu0 %v1495
    %v1566 = vpop.f32.mrb[0].mxu0
    %v1567 = vadd.f32 0.0, %v1566
    %v1568 = vpop.f32.mrb[0].mxu0
    %1569 = vdwg.mxu0
    %v1570 = vadd.f32 %v1458, %v1567
    %v1571 = vld [vmem:[%s0 + $0x3] sm:$0x1]
    %v1572 = vld [vmem:[%s0 + $0xb] sm:$0x1]
    %v1573 = vld [vmem:[%s0 + $0x13] sm:$0x1]
    %v1574 = vld [vmem:[%s0 + $0x1b] sm:$0x1]
    %v1575 = vld [vmem:[%s0 + $0x23] sm:$0x1]
    %v1576 = vld [vmem:[%s0 + $0x2b] sm:$0x1]
    %v1577 = vld [vmem:[%s0 + $0x33] sm:$0x1]
    %v1578 = vld [vmem:[%s0 + $0x3b] sm:$0x1]
    %v1579 = vld [vmem:[%s353] sm:$0xff]
    %v1580 = vld [vmem:[%s353 + $0x8] sm:$0x7f]
    %v1589 = vrot.slane %v1572, 7
    %v1590 = vsel %vm42, %v1589, %v1571
    %v1591 = vrot.slane %v1573, 6
    %v1592 = vsel %vm45, %v1591, %v1590
    %v1593 = vrot.slane %v1574, 5
    %v1594 = vsel %vm48, %v1593, %v1592
    %v1595 = vrot.slane %v1575, 4
    %v1596 = vsel %vm51, %v1595, %v1594
    %v1597 = vrot.slane %v1576, 3
    %v1598 = vsel %vm54, %v1597, %v1596
    %v1599 = vrot.slane %v1577, 2
    %v1600 = vsel %vm57, %v1599, %v1598
    %v1601 = vrot.slane %v1578, 1
    %v1602 = vsel %vm60, %v1601, %v1600
    %1603 = vrot.lane.b32.xlu0 %v1602, 98
    %v1604 = vpop.permute.xlu0 %1603
    %v1605 = vsel %vm62, %v1604, 0
    %v1608 = vsel %vm65, %v1580, 0
    %1610 = vmatprep.subr.mxu0 0.0
    %1611 = vmatpush1.msra.mxu0 %v1579
    %1612 = vmatprep.subr.mxu0 0.0
    %1613 = vmatpush1.msra.mxu0 %v1608
    %1614 = vmatprep.subr.mxu0 0.0
    %1615 = vmatpush1.msra.mxu0 0.0
    %1616 = vmatprep.subr.mxu0 0.0
    %1617 = vmatpush1.msra.mxu0 0.0
    %1618 = vmatprep.subr.mxu0 0.0
    %1619 = vmatpush1.msra.mxu0 0.0
    %1620 = vmatprep.subr.mxu0 0.0
    %1621 = vmatpush1.msra.mxu0 0.0
    %1622 = vmatprep.subr.mxu0 0.0
    %1623 = vmatpush1.msra.mxu0 0.0
    %1624 = vmatprep.subr.mxu0 0.0
    %1625 = vmatpush1.msra.mxu0 0.0
    %1626 = vmatprep.subr.mxu0 0.0
    %1627 = vmatpush1.msra.mxu0 0.0
    %1628 = vmatprep.subr.mxu0 0.0
    %1629 = vmatpush1.msra.mxu0 0.0
    %1630 = vmatprep.subr.mxu0 0.0
    %1631 = vmatpush1.msra.mxu0 0.0
    %1632 = vmatprep.subr.mxu0 0.0
    %1633 = vmatpush1.msra.mxu0 0.0
    %1634 = vmatprep.subr.mxu0 0.0
    %1635 = vmatpush1.msra.mxu0 0.0
    %1636 = vmatprep.subr.mxu0 0.0
    %1637 = vmatpush1.msra.mxu0 0.0
    %1638 = vmatprep.subr.mxu0 0.0
    %1639 = vmatpush1.msra.mxu0 0.0
    %1640 = vmatprep.subr.mxu0 0.0
    %1641 = vmatpush1.msra.mxu0 0.0
    %1642 = vmatprep.subr.mxu0 0.0
    %1643 = vmatpush1.msra.mxu0 0.0
    %1644 = vmatprep.subr.mxu0 0.0
    %1645 = vmatpush1.msra.mxu0 0.0
    %1646 = vmatprep.subr.mxu0 0.0
    %1647 = vmatpush1.msra.mxu0 0.0
    %1648 = vmatprep.subr.mxu0 0.0
    %1649 = vmatpush1.msra.mxu0 0.0
    %1650 = vmatprep.subr.mxu0 0.0
    %1651 = vmatpush1.msra.mxu0 0.0
    %1652 = vmatprep.subr.mxu0 0.0
    %1653 = vmatpush1.msra.mxu0 0.0
    %1654 = vmatprep.subr.mxu0 0.0
    %1655 = vmatpush1.msra.mxu0 0.0
    %1656 = vmatprep.subr.mxu0 0.0
    %1657 = vmatpush1.msra.mxu0 0.0
    %1658 = vmatprep.subr.mxu0 0.0
    %1659 = vmatpush1.msra.mxu0 0.0
    %1660 = vmatprep.subr.mxu0 0.0
    %1661 = vmatpush1.msra.mxu0 0.0
    %1662 = vmatprep.subr.mxu0 0.0
    %1663 = vmatpush1.msra.mxu0 0.0
    %1664 = vmatprep.subr.mxu0 0.0
    %1665 = vmatpush1.msra.mxu0 0.0
    %1666 = vmatprep.subr.mxu0 0.0
    %1667 = vmatpush1.msra.mxu0 0.0
    %1668 = vmatprep.subr.mxu0 0.0
    %1669 = vmatpush1.msra.mxu0 0.0
    %1670 = vmatprep.subr.mxu0 0.0
    %1671 = vmatpush1.msra.mxu0 0.0
    %1672 = vmatprep.subr.mxu0 0.0
    %1673 = vmatpush1.msra.mxu0 0.0
    %1674 = vmatprep.mubr.f32.mxu0 0.0
    %1675 = vmatmul.mubr.f32.gmra.mrb[0].mxu0 %v1605
    %v1676 = vpop.f32.mrb[0].mxu0
    %v1677 = vadd.f32 0.0, %v1676
    %v1678 = vpop.f32.mrb[0].mxu0
    %1679 = vdwg.mxu0
    %v1680 = vadd.f32 %v1570, %v1677
    %v1681 = vld [vmem:[%s0 + $0x4] sm:$0x1]
    %v1682 = vld [vmem:[%s0 + $0xc] sm:$0x1]
    %v1683 = vld [vmem:[%s0 + $0x14] sm:$0x1]
    %v1684 = vld [vmem:[%s0 + $0x1c] sm:$0x1]
    %v1685 = vld [vmem:[%s0 + $0x24] sm:$0x1]
    %v1686 = vld [vmem:[%s0 + $0x2c] sm:$0x1]
    %v1687 = vld [vmem:[%s0 + $0x34] sm:$0x1]
    %v1688 = vld [vmem:[%s0 + $0x3c] sm:$0x1]
    %v1689 = vld [vmem:[%s462] sm:$0xff]
    %v1690 = vld [vmem:[%s462 + $0x8] sm:$0x7f]
    %v1699 = vrot.slane %v1682, 7
    %v1700 = vsel %vm42, %v1699, %v1681
    %v1701 = vrot.slane %v1683, 6
    %v1702 = vsel %vm45, %v1701, %v1700
    %v1703 = vrot.slane %v1684, 5
    %v1704 = vsel %vm48, %v1703, %v1702
    %v1705 = vrot.slane %v1685, 4
    %v1706 = vsel %vm51, %v1705, %v1704
    %v1707 = vrot.slane %v1686, 3
    %v1708 = vsel %vm54, %v1707, %v1706
    %v1709 = vrot.slane %v1687, 2
    %v1710 = vsel %vm57, %v1709, %v1708
    %v1711 = vrot.slane %v1688, 1
    %v1712 = vsel %vm60, %v1711, %v1710
    %1713 = vrot.lane.b32.xlu0 %v1712, 98
    %v1714 = vpop.permute.xlu0 %1713
    %v1715 = vsel %vm62, %v1714, 0
    %v1718 = vsel %vm65, %v1690, 0
    %1720 = vmatprep.subr.mxu0 0.0
    %1721 = vmatpush1.msra.mxu0 %v1689
    %1722 = vmatprep.subr.mxu0 0.0
    %1723 = vmatpush1.msra.mxu0 %v1718
    %1724 = vmatprep.subr.mxu0 0.0
    %1725 = vmatpush1.msra.mxu0 0.0
    %1726 = vmatprep.subr.mxu0 0.0
    %1727 = vmatpush1.msra.mxu0 0.0
    %1728 = vmatprep.subr.mxu0 0.0
    %1729 = vmatpush1.msra.mxu0 0.0
    %1730 = vmatprep.subr.mxu0 0.0
    %1731 = vmatpush1.msra.mxu0 0.0
    %1732 = vmatprep.subr.mxu0 0.0
    %1733 = vmatpush1.msra.mxu0 0.0
    %1734 = vmatprep.subr.mxu0 0.0
    %1735 = vmatpush1.msra.mxu0 0.0
    %1736 = vmatprep.subr.mxu0 0.0
    %1737 = vmatpush1.msra.mxu0 0.0
    %1738 = vmatprep.subr.mxu0 0.0
    %1739 = vmatpush1.msra.mxu0 0.0
    %1740 = vmatprep.subr.mxu0 0.0
    %1741 = vmatpush1.msra.mxu0 0.0
    %1742 = vmatprep.subr.mxu0 0.0
    %1743 = vmatpush1.msra.mxu0 0.0
    %1744 = vmatprep.subr.mxu0 0.0
    %1745 = vmatpush1.msra.mxu0 0.0
    %1746 = vmatprep.subr.mxu0 0.0
    %1747 = vmatpush1.msra.mxu0 0.0
    %1748 = vmatprep.subr.mxu0 0.0
    %1749 = vmatpush1.msra.mxu0 0.0
    %1750 = vmatprep.subr.mxu0 0.0
    %1751 = vmatpush1.msra.mxu0 0.0
    %1752 = vmatprep.subr.mxu0 0.0
    %1753 = vmatpush1.msra.mxu0 0.0
    %1754 = vmatprep.subr.mxu0 0.0
    %1755 = vmatpush1.msra.mxu0 0.0
    %1756 = vmatprep.subr.mxu0 0.0
    %1757 = vmatpush1.msra.mxu0 0.0
    %1758 = vmatprep.subr.mxu0 0.0
    %1759 = vmatpush1.msra.mxu0 0.0
    %1760 = vmatprep.subr.mxu0 0.0
    %1761 = vmatpush1.msra.mxu0 0.0
    %1762 = vmatprep.subr.mxu0 0.0
    %1763 = vmatpush1.msra.mxu0 0.0
    %1764 = vmatprep.subr.mxu0 0.0
    %1765 = vmatpush1.msra.mxu0 0.0
    %1766 = vmatprep.subr.mxu0 0.0
    %1767 = vmatpush1.msra.mxu0 0.0
    %1768 = vmatprep.subr.mxu0 0.0
    %1769 = vmatpush1.msra.mxu0 0.0
    %1770 = vmatprep.subr.mxu0 0.0
    %1771 = vmatpush1.msra.mxu0 0.0
    %1772 = vmatprep.subr.mxu0 0.0
    %1773 = vmatpush1.msra.mxu0 0.0
    %1774 = vmatprep.subr.mxu0 0.0
    %1775 = vmatpush1.msra.mxu0 0.0
    %1776 = vmatprep.subr.mxu0 0.0
    %1777 = vmatpush1.msra.mxu0 0.0
    %1778 = vmatprep.subr.mxu0 0.0
    %1779 = vmatpush1.msra.mxu0 0.0
    %1780 = vmatprep.subr.mxu0 0.0
    %1781 = vmatpush1.msra.mxu0 0.0
    %1782 = vmatprep.subr.mxu0 0.0
    %1783 = vmatpush1.msra.mxu0 0.0
    %1784 = vmatprep.mubr.f32.mxu0 0.0
    %1785 = vmatmul.mubr.f32.gmra.mrb[0].mxu0 %v1715
    %v1786 = vpop.f32.mrb[0].mxu0
    %v1787 = vadd.f32 0.0, %v1786
    %v1788 = vpop.f32.mrb[0].mxu0
    %1789 = vdwg.mxu0
    %v1790 = vadd.f32 %v1680, %v1787
    %v1792 = vcombine.high %v1790, %v1790
    %v1794 = vunpack.c.l.s4 1966171168
    %v1795 = vunpack.c.0.s8 %v1794
    %v1796 = vlaneseq
    %v1797 = vshrl.u32 %v1796, 7
    %v1798 = vsub.s32 %v1795, %v1797
    %v1799 = vrot.slane %v1790, %v1798
    %v1801 = vunpack.c.l.s4 1966171168
    %v1802 = vunpack.c.0.s8 %v1801
    %v1803 = vlaneseq
    %v1804 = vshrl.u32 %v1803, 7
    %v1805 = vsub.s32 %v1802, %v1804
    %v1806 = vrot.slane %v1792, %v1805
    %v1807 = vcombine.high %v1799, %v1799
    %v1808 = vcombine.high %v1806, %v1806
    %v1810 = vunpack.c.l.s4 1966171168
    %v1811 = vunpack.c.0.s8 %v1810
    %v1812 = vlaneseq
    %v1813 = vshrl.u32 %v1812, 7
    %v1814 = vsub.s32 %v1811, %v1813
    %v1815 = vrot.slane %v1799, %v1814
    %v1817 = vunpack.c.l.s4 1966171168
    %v1818 = vunpack.c.0.s8 %v1817
    %v1819 = vlaneseq
    %v1820 = vshrl.u32 %v1819, 7
    %v1821 = vsub.s32 %v1818, %v1820
    %v1822 = vrot.slane %v1806, %v1821
    %v1824 = vunpack.c.l.s4 1966171168
    %v1825 = vunpack.c.0.s8 %v1824
    %v1826 = vlaneseq
    %v1827 = vshrl.u32 %v1826, 7
    %v1828 = vsub.s32 %v1825, %v1827
    %v1829 = vrot.slane %v1807, %v1828
    %v1831 = vunpack.c.l.s4 1966171168
    %v1832 = vunpack.c.0.s8 %v1831
    %v1833 = vlaneseq
    %v1834 = vshrl.u32 %v1833, 7
    %v1835 = vsub.s32 %v1832, %v1834
    %v1836 = vrot.slane %v1808, %v1835
    %v1837 = vcombine.high %v1815, %v1815
    %v1838 = vcombine.high %v1822, %v1822
    %v1839 = vcombine.high %v1829, %v1829
    %v1840 = vcombine.high %v1836, %v1836
    %1849 = vst [vmem:[#allocation2 + $0x2] sm:$0x1] %v1815
    %1850 = vst [vmem:[#allocation2 + $0x6] sm:$0x1] %v1829
    %1851 = vst [vmem:[#allocation2 + $0xa] sm:$0x1] %v1837
    %1852 = vst [vmem:[#allocation2 + $0xe] sm:$0x1] %v1839
    %1853 = vst [vmem:[#allocation2 + $0x12] sm:$0x1] %v1822
    %1854 = vst [vmem:[#allocation2 + $0x16] sm:$0x1] %v1836
    %1855 = vst [vmem:[#allocation2 + $0x1a] sm:$0x1] %v1838
    %1856 = vst [vmem:[#allocation2 + $0x1e] sm:$0x1] %v1840
    %v1857 = vld [vmem:[%s0] sm:$0x1]
    %v1858 = vld [vmem:[%s0 + $0x8] sm:$0x1]
    %v1859 = vld [vmem:[%s0 + $0x10] sm:$0x1]
    %v1860 = vld [vmem:[%s0 + $0x18] sm:$0x1]
    %v1861 = vld [vmem:[%s0 + $0x20] sm:$0x1]
    %v1862 = vld [vmem:[%s0 + $0x28] sm:$0x1]
    %v1863 = vld [vmem:[%s0 + $0x30] sm:$0x1]
    %v1864 = vld [vmem:[%s0 + $0x38] sm:$0x1]
    %v1865 = vld [vmem:[%s1] sm:$0xff]
    %v1866 = vld [vmem:[%s1 + $0x8] sm:$0x7f]
    %v1867 = vld [vmem:[%s0 + $0x1] sm:$0x1]
    %v1868 = vld [vmem:[%s0 + $0x9] sm:$0x1]
    %v1869 = vld [vmem:[%s0 + $0x11] sm:$0x1]
    %v1870 = vld [vmem:[%s0 + $0x19] sm:$0x1]
    %v1871 = vld [vmem:[%s0 + $0x21] sm:$0x1]
    %v1872 = vld [vmem:[%s0 + $0x29] sm:$0x1]
    %v1873 = vld [vmem:[%s0 + $0x31] sm:$0x1]
    %v1874 = vld [vmem:[%s0 + $0x39] sm:$0x1]
    %v1875 = vld [vmem:[%s30] sm:$0xff]
    %v1876 = vld [vmem:[%s30 + $0x8] sm:$0x7f]
    %v1885 = vrot.slane %v1868, 7
    %v1886 = vsel %vm42, %v1885, %v1867
    %v1887 = vrot.slane %v1869, 6
    %v1888 = vsel %vm45, %v1887, %v1886
    %v1889 = vrot.slane %v1870, 5
    %v1890 = vsel %vm48, %v1889, %v1888
    %v1891 = vrot.slane %v1871, 4
    %v1892 = vsel %vm51, %v1891, %v1890
    %v1893 = vrot.slane %v1872, 3
    %v1894 = vsel %vm54, %v1893, %v1892
    %v1895 = vrot.slane %v1873, 2
    %v1896 = vsel %vm57, %v1895, %v1894
    %v1897 = vrot.slane %v1874, 1
    %v1898 = vsel %vm60, %v1897, %v1896
    %1899 = vrot.lane.b32.xlu0 %v1898, 83
    %v1900 = vpop.permute.xlu0 %1899
    %v1901 = vsel %vm62, %v1900, 0
    %v1904 = vsel %vm65, %v1876, 0
    %1906 = vmatprep.subr.mxu0 0.0
    %1907 = vmatpush1.msra.mxu0 %v1875
    %1908 = vmatprep.subr.mxu0 0.0
    %1909 = vmatpush1.msra.mxu0 %v1904
    %1910 = vmatprep.subr.mxu0 0.0
    %1911 = vmatpush1.msra.mxu0 0.0
    %1912 = vmatprep.subr.mxu0 0.0
    %1913 = vmatpush1.msra.mxu0 0.0
    %1914 = vmatprep.subr.mxu0 0.0
    %1915 = vmatpush1.msra.mxu0 0.0
    %1916 = vmatprep.subr.mxu0 0.0
    %1917 = vmatpush1.msra.mxu0 0.0
    %1918 = vmatprep.subr.mxu0 0.0
    %1919 = vmatpush1.msra.mxu0 0.0
    %1920 = vmatprep.subr.mxu0 0.0
    %1921 = vmatpush1.msra.mxu0 0.0
    %1922 = vmatprep.subr.mxu0 0.0
    %1923 = vmatpush1.msra.mxu0 0.0
    %1924 = vmatprep.subr.mxu0 0.0
    %1925 = vmatpush1.msra.mxu0 0.0
    %1926 = vmatprep.subr.mxu0 0.0
    %1927 = vmatpush1.msra.mxu0 0.0
    %1928 = vmatprep.subr.mxu0 0.0
    %1929 = vmatpush1.msra.mxu0 0.0
    %1930 = vmatprep.subr.mxu0 0.0
    %1931 = vmatpush1.msra.mxu0 0.0
    %1932 = vmatprep.subr.mxu0 0.0
    %1933 = vmatpush1.msra.mxu0 0.0
    %1934 = vmatprep.subr.mxu0 0.0
    %1935 = vmatpush1.msra.mxu0 0.0
    %1936 = vmatprep.subr.mxu0 0.0
    %1937 = vmatpush1.msra.mxu0 0.0
    %1938 = vmatprep.subr.mxu0 0.0
    %1939 = vmatpush1.msra.mxu0 0.0
    %1940 = vmatprep.subr.mxu0 0.0
    %1941 = vmatpush1.msra.mxu0 0.0
    %1942 = vmatprep.subr.mxu0 0.0
    %1943 = vmatpush1.msra.mxu0 0.0
    %1944 = vmatprep.subr.mxu0 0.0
    %1945 = vmatpush1.msra.mxu0 0.0
    %1946 = vmatprep.subr.mxu0 0.0
    %1947 = vmatpush1.msra.mxu0 0.0
    %1948 = vmatprep.subr.mxu0 0.0
    %1949 = vmatpush1.msra.mxu0 0.0
    %1950 = vmatprep.subr.mxu0 0.0
    %1951 = vmatpush1.msra.mxu0 0.0
    %1952 = vmatprep.subr.mxu0 0.0
    %1953 = vmatpush1.msra.mxu0 0.0
    %1954 = vmatprep.subr.mxu0 0.0
    %1955 = vmatpush1.msra.mxu0 0.0
    %1956 = vmatprep.subr.mxu0 0.0
    %1957 = vmatpush1.msra.mxu0 0.0
    %1958 = vmatprep.subr.mxu0 0.0
    %1959 = vmatpush1.msra.mxu0 0.0
    %1960 = vmatprep.subr.mxu0 0.0
    %1961 = vmatpush1.msra.mxu0 0.0
    %1962 = vmatprep.subr.mxu0 0.0
    %1963 = vmatpush1.msra.mxu0 0.0
    %1964 = vmatprep.subr.mxu0 0.0
    %1965 = vmatpush1.msra.mxu0 0.0
    %1966 = vmatprep.subr.mxu0 0.0
    %1967 = vmatpush1.msra.mxu0 0.0
    %1968 = vmatprep.subr.mxu0 0.0
    %1969 = vmatpush1.msra.mxu0 0.0
    %1970 = vmatprep.mubr.f32.mxu0 0.0
    %1971 = vmatmul.mubr.f32.gmra.mrb[0].mxu0 %v1901
    %v1972 = vpop.f32.mrb[0].mxu0
    %v1973 = vadd.f32 0.0, %v1972
    %v1974 = vpop.f32.mrb[0].mxu0
    %1975 = vdwg.mxu0
    %v1984 = vrot.slane %v1858, 7
    %v1985 = vsel %vm42, %v1984, %v1857
    %v1986 = vrot.slane %v1859, 6
    %v1987 = vsel %vm45, %v1986, %v1985
    %v1988 = vrot.slane %v1860, 5
    %v1989 = vsel %vm48, %v1988, %v1987
    %v1990 = vrot.slane %v1861, 4
    %v1991 = vsel %vm51, %v1990, %v1989
    %v1992 = vrot.slane %v1862, 3
    %v1993 = vsel %vm54, %v1992, %v1991
    %v1994 = vrot.slane %v1863, 2
    %v1995 = vsel %vm57, %v1994, %v1993
    %v1996 = vrot.slane %v1864, 1
    %v1997 = vsel %vm60, %v1996, %v1995
    %1998 = vrot.lane.b32.xlu0 %v1997, 83
    %v1999 = vpop.permute.xlu0 %1998
    %v2000 = vsel %vm62, %v1999, 0
    %v2003 = vsel %vm65, %v1866, 0
    %2005 = vmatprep.subr.mxu0 0.0
    %2006 = vmatpush1.msra.mxu0 %v1865
    %2007 = vmatprep.subr.mxu0 0.0
    %2008 = vmatpush1.msra.mxu0 %v2003
    %2009 = vmatprep.subr.mxu0 0.0
    %2010 = vmatpush1.msra.mxu0 0.0
    %2011 = vmatprep.subr.mxu0 0.0
    %2012 = vmatpush1.msra.mxu0 0.0
    %2013 = vmatprep.subr.mxu0 0.0
    %2014 = vmatpush1.msra.mxu0 0.0
    %2015 = vmatprep.subr.mxu0 0.0
    %2016 = vmatpush1.msra.mxu0 0.0
    %2017 = vmatprep.subr.mxu0 0.0
    %2018 = vmatpush1.msra.mxu0 0.0
    %2019 = vmatprep.subr.mxu0 0.0
    %2020 = vmatpush1.msra.mxu0 0.0
    %2021 = vmatprep.subr.mxu0 0.0
    %2022 = vmatpush1.msra.mxu0 0.0
    %2023 = vmatprep.subr.mxu0 0.0
    %2024 = vmatpush1.msra.mxu0 0.0
    %2025 = vmatprep.subr.mxu0 0.0
    %2026 = vmatpush1.msra.mxu0 0.0
    %2027 = vmatprep.subr.mxu0 0.0
    %2028 = vmatpush1.msra.mxu0 0.0
    %2029 = vmatprep.subr.mxu0 0.0
    %2030 = vmatpush1.msra.mxu0 0.0
    %2031 = vmatprep.subr.mxu0 0.0
    %2032 = vmatpush1.msra.mxu0 0.0
    %2033 = vmatprep.subr.mxu0 0.0
    %2034 = vmatpush1.msra.mxu0 0.0
    %2035 = vmatprep.subr.mxu0 0.0
    %2036 = vmatpush1.msra.mxu0 0.0
    %2037 = vmatprep.subr.mxu0 0.0
    %2038 = vmatpush1.msra.mxu0 0.0
    %2039 = vmatprep.subr.mxu0 0.0
    %2040 = vmatpush1.msra.mxu0 0.0
    %2041 = vmatprep.subr.mxu0 0.0
    %2042 = vmatpush1.msra.mxu0 0.0
    %2043 = vmatprep.subr.mxu0 0.0
    %2044 = vmatpush1.msra.mxu0 0.0
    %2045 = vmatprep.subr.mxu0 0.0
    %2046 = vmatpush1.msra.mxu0 0.0
    %2047 = vmatprep.subr.mxu0 0.0
    %2048 = vmatpush1.msra.mxu0 0.0
    %2049 = vmatprep.subr.mxu0 0.0
    %2050 = vmatpush1.msra.mxu0 0.0
    %2051 = vmatprep.subr.mxu0 0.0
    %2052 = vmatpush1.msra.mxu0 0.0
    %2053 = vmatprep.subr.mxu0 0.0
    %2054 = vmatpush1.msra.mxu0 0.0
    %2055 = vmatprep.subr.mxu0 0.0
    %2056 = vmatpush1.msra.mxu0 0.0
    %2057 = vmatprep.subr.mxu0 0.0
    %2058 = vmatpush1.msra.mxu0 0.0
    %2059 = vmatprep.subr.mxu0 0.0
    %2060 = vmatpush1.msra.mxu0 0.0
    %2061 = vmatprep.subr.mxu0 0.0
    %2062 = vmatpush1.msra.mxu0 0.0
    %2063 = vmatprep.subr.mxu0 0.0
    %2064 = vmatpush1.msra.mxu0 0.0
    %2065 = vmatprep.subr.mxu0 0.0
    %2066 = vmatpush1.msra.mxu0 0.0
    %2067 = vmatprep.subr.mxu0 0.0
    %2068 = vmatpush1.msra.mxu0 0.0
    %2069 = vmatprep.mubr.f32.mxu0 0.0
    %2070 = vmatmul.mubr.f32.gmra.mrb[0].mxu0 %v2000
    %v2071 = vpop.f32.mrb[0].mxu0
    %v2072 = vadd.f32 %v1973, %v2071
    %v2073 = vpop.f32.mrb[0].mxu0
    %2074 = vdwg.mxu0
    %v2075 = vld [vmem:[%s0 + $0x2] sm:$0x1]
    %v2076 = vld [vmem:[%s0 + $0xa] sm:$0x1]
    %v2077 = vld [vmem:[%s0 + $0x12] sm:$0x1]
    %v2078 = vld [vmem:[%s0 + $0x1a] sm:$0x1]
    %v2079 = vld [vmem:[%s0 + $0x22] sm:$0x1]
    %v2080 = vld [vmem:[%s0 + $0x2a] sm:$0x1]
    %v2081 = vld [vmem:[%s0 + $0x32] sm:$0x1]
    %v2082 = vld [vmem:[%s0 + $0x3a] sm:$0x1]
    %v2083 = vld [vmem:[%s244] sm:$0xff]
    %v2084 = vld [vmem:[%s244 + $0x8] sm:$0x7f]
    %v2093 = vrot.slane %v2076, 7
    %v2094 = vsel %vm42, %v2093, %v2075
    %v2095 = vrot.slane %v2077, 6
    %v2096 = vsel %vm45, %v2095, %v2094
    %v2097 = vrot.slane %v2078, 5
    %v2098 = vsel %vm48, %v2097, %v2096
    %v2099 = vrot.slane %v2079, 4
    %v2100 = vsel %vm51, %v2099, %v2098
    %v2101 = vrot.slane %v2080, 3
    %v2102 = vsel %vm54, %v2101, %v2100
    %v2103 = vrot.slane %v2081, 2
    %v2104 = vsel %vm57, %v2103, %v2102
    %v2105 = vrot.slane %v2082, 1
    %v2106 = vsel %vm60, %v2105, %v2104
    %2107 = vrot.lane.b32.xlu0 %v2106, 83
    %v2108 = vpop.permute.xlu0 %2107
    %v2109 = vsel %vm62, %v2108, 0
    %v2112 = vsel %vm65, %v2084, 0
    %2114 = vmatprep.subr.mxu0 0.0
    %2115 = vmatpush1.msra.mxu0 %v2083
    %2116 = vmatprep.subr.mxu0 0.0
    %2117 = vmatpush1.msra.mxu0 %v2112
    %2118 = vmatprep.subr.mxu0 0.0
    %2119 = vmatpush1.msra.mxu0 0.0
    %2120 = vmatprep.subr.mxu0 0.0
    %2121 = vmatpush1.msra.mxu0 0.0
    %2122 = vmatprep.subr.mxu0 0.0
    %2123 = vmatpush1.msra.mxu0 0.0
    %2124 = vmatprep.subr.mxu0 0.0
    %2125 = vmatpush1.msra.mxu0 0.0
    %2126 = vmatprep.subr.mxu0 0.0
    %2127 = vmatpush1.msra.mxu0 0.0
    %2128 = vmatprep.subr.mxu0 0.0
    %2129 = vmatpush1.msra.mxu0 0.0
    %2130 = vmatprep.subr.mxu0 0.0
    %2131 = vmatpush1.msra.mxu0 0.0
    %2132 = vmatprep.subr.mxu0 0.0
    %2133 = vmatpush1.msra.mxu0 0.0
    %2134 = vmatprep.subr.mxu0 0.0
    %2135 = vmatpush1.msra.mxu0 0.0
    %2136 = vmatprep.subr.mxu0 0.0
    %2137 = vmatpush1.msra.mxu0 0.0
    %2138 = vmatprep.subr.mxu0 0.0
    %2139 = vmatpush1.msra.mxu0 0.0
    %2140 = vmatprep.subr.mxu0 0.0
    %2141 = vmatpush1.msra.mxu0 0.0
    %2142 = vmatprep.subr.mxu0 0.0
    %2143 = vmatpush1.msra.mxu0 0.0
    %2144 = vmatprep.subr.mxu0 0.0
    %2145 = vmatpush1.msra.mxu0 0.0
    %2146 = vmatprep.subr.mxu0 0.0
    %2147 = vmatpush1.msra.mxu0 0.0
    %2148 = vmatprep.subr.mxu0 0.0
    %2149 = vmatpush1.msra.mxu0 0.0
    %2150 = vmatprep.subr.mxu0 0.0
    %2151 = vmatpush1.msra.mxu0 0.0
    %2152 = vmatprep.subr.mxu0 0.0
    %2153 = vmatpush1.msra.mxu0 0.0
    %2154 = vmatprep.subr.mxu0 0.0
    %2155 = vmatpush1.msra.mxu0 0.0
    %2156 = vmatprep.subr.mxu0 0.0
    %2157 = vmatpush1.msra.mxu0 0.0
    %2158 = vmatprep.subr.mxu0 0.0
    %2159 = vmatpush1.msra.mxu0 0.0
    %2160 = vmatprep.subr.mxu0 0.0
    %2161 = vmatpush1.msra.mxu0 0.0
    %2162 = vmatprep.subr.mxu0 0.0
    %2163 = vmatpush1.msra.mxu0 0.0
    %2164 = vmatprep.subr.mxu0 0.0
    %2165 = vmatpush1.msra.mxu0 0.0
    %2166 = vmatprep.subr.mxu0 0.0
    %2167 = vmatpush1.msra.mxu0 0.0
    %2168 = vmatprep.subr.mxu0 0.0
    %2169 = vmatpush1.msra.mxu0 0.0
    %2170 = vmatprep.subr.mxu0 0.0
    %2171 = vmatpush1.msra.mxu0 0.0
    %2172 = vmatprep.subr.mxu0 0.0
    %2173 = vmatpush1.msra.mxu0 0.0
    %2174 = vmatprep.subr.mxu0 0.0
    %2175 = vmatpush1.msra.mxu0 0.0
    %2176 = vmatprep.subr.mxu0 0.0
    %2177 = vmatpush1.msra.mxu0 0.0
    %2178 = vmatprep.mubr.f32.mxu0 0.0
    %2179 = vmatmul.mubr.f32.gmra.mrb[0].mxu0 %v2109
    %v2180 = vpop.f32.mrb[0].mxu0
    %v2181 = vadd.f32 0.0, %v2180
    %v2182 = vpop.f32.mrb[0].mxu0
    %2183 = vdwg.mxu0
    %v2184 = vadd.f32 %v2072, %v2181
    %v2185 = vld [vmem:[%s0 + $0x3] sm:$0x1]
    %v2186 = vld [vmem:[%s0 + $0xb] sm:$0x1]
    %v2187 = vld [vmem:[%s0 + $0x13] sm:$0x1]
    %v2188 = vld [vmem:[%s0 + $0x1b] sm:$0x1]
    %v2189 = vld [vmem:[%s0 + $0x23] sm:$0x1]
    %v2190 = vld [vmem:[%s0 + $0x2b] sm:$0x1]
    %v2191 = vld [vmem:[%s0 + $0x33] sm:$0x1]
    %v2192 = vld [vmem:[%s0 + $0x3b] sm:$0x1]
    %v2193 = vld [vmem:[%s353] sm:$0xff]
    %v2194 = vld [vmem:[%s353 + $0x8] sm:$0x7f]
    %v2203 = vrot.slane %v2186, 7
    %v2204 = vsel %vm42, %v2203, %v2185
    %v2205 = vrot.slane %v2187, 6
    %v2206 = vsel %vm45, %v2205, %v2204
    %v2207 = vrot.slane %v2188, 5
    %v2208 = vsel %vm48, %v2207, %v2206
    %v2209 = vrot.slane %v2189, 4
    %v2210 = vsel %vm51, %v2209, %v2208
    %v2211 = vrot.slane %v2190, 3
    %v2212 = vsel %vm54, %v2211, %v2210
    %v2213 = vrot.slane %v2191, 2
    %v2214 = vsel %vm57, %v2213, %v2212
    %v2215 = vrot.slane %v2192, 1
    %v2216 = vsel %vm60, %v2215, %v2214
    %2217 = vrot.lane.b32.xlu0 %v2216, 83
    %v2218 = vpop.permute.xlu0 %2217
    %v2219 = vsel %vm62, %v2218, 0
    %v2222 = vsel %vm65, %v2194, 0
    %2224 = vmatprep.subr.mxu0 0.0
    %2225 = vmatpush1.msra.mxu0 %v2193
    %2226 = vmatprep.subr.mxu0 0.0
    %2227 = vmatpush1.msra.mxu0 %v2222
    %2228 = vmatprep.subr.mxu0 0.0
    %2229 = vmatpush1.msra.mxu0 0.0
    %2230 = vmatprep.subr.mxu0 0.0
    %2231 = vmatpush1.msra.mxu0 0.0
    %2232 = vmatprep.subr.mxu0 0.0
    %2233 = vmatpush1.msra.mxu0 0.0
    %2234 = vmatprep.subr.mxu0 0.0
    %2235 = vmatpush1.msra.mxu0 0.0
    %2236 = vmatprep.subr.mxu0 0.0
    %2237 = vmatpush1.msra.mxu0 0.0
    %2238 = vmatprep.subr.mxu0 0.0
    %2239 = vmatpush1.msra.mxu0 0.0
    %2240 = vmatprep.subr.mxu0 0.0
    %2241 = vmatpush1.msra.mxu0 0.0
    %2242 = vmatprep.subr.mxu0 0.0
    %2243 = vmatpush1.msra.mxu0 0.0
    %2244 = vmatprep.subr.mxu0 0.0
    %2245 = vmatpush1.msra.mxu0 0.0
    %2246 = vmatprep.subr.mxu0 0.0
    %2247 = vmatpush1.msra.mxu0 0.0
    %2248 = vmatprep.subr.mxu0 0.0
    %2249 = vmatpush1.msra.mxu0 0.0
    %2250 = vmatprep.subr.mxu0 0.0
    %2251 = vmatpush1.msra.mxu0 0.0
    %2252 = vmatprep.subr.mxu0 0.0
    %2253 = vmatpush1.msra.mxu0 0.0
    %2254 = vmatprep.subr.mxu0 0.0
    %2255 = vmatpush1.msra.mxu0 0.0
    %2256 = vmatprep.subr.mxu0 0.0
    %2257 = vmatpush1.msra.mxu0 0.0
    %2258 = vmatprep.subr.mxu0 0.0
    %2259 = vmatpush1.msra.mxu0 0.0
    %2260 = vmatprep.subr.mxu0 0.0
    %2261 = vmatpush1.msra.mxu0 0.0
    %2262 = vmatprep.subr.mxu0 0.0
    %2263 = vmatpush1.msra.mxu0 0.0
    %2264 = vmatprep.subr.mxu0 0.0
    %2265 = vmatpush1.msra.mxu0 0.0
    %2266 = vmatprep.subr.mxu0 0.0
    %2267 = vmatpush1.msra.mxu0 0.0
    %2268 = vmatprep.subr.mxu0 0.0
    %2269 = vmatpush1.msra.mxu0 0.0
    %2270 = vmatprep.subr.mxu0 0.0
    %2271 = vmatpush1.msra.mxu0 0.0
    %2272 = vmatprep.subr.mxu0 0.0
    %2273 = vmatpush1.msra.mxu0 0.0
    %2274 = vmatprep.subr.mxu0 0.0
    %2275 = vmatpush1.msra.mxu0 0.0
    %2276 = vmatprep.subr.mxu0 0.0
    %2277 = vmatpush1.msra.mxu0 0.0
    %2278 = vmatprep.subr.mxu0 0.0
    %2279 = vmatpush1.msra.mxu0 0.0
    %2280 = vmatprep.subr.mxu0 0.0
    %2281 = vmatpush1.msra.mxu0 0.0
    %2282 = vmatprep.subr.mxu0 0.0
    %2283 = vmatpush1.msra.mxu0 0.0
    %2284 = vmatprep.subr.mxu0 0.0
    %2285 = vmatpush1.msra.mxu0 0.0
    %2286 = vmatprep.subr.mxu0 0.0
    %2287 = vmatpush1.msra.mxu0 0.0
    %2288 = vmatprep.mubr.f32.mxu0 0.0
    %2289 = vmatmul.mubr.f32.gmra.mrb[0].mxu0 %v2219
    %v2290 = vpop.f32.mrb[0].mxu0
    %v2291 = vadd.f32 0.0, %v2290
    %v2292 = vpop.f32.mrb[0].mxu0
    %2293 = vdwg.mxu0
    %v2294 = vadd.f32 %v2184, %v2291
    %v2295 = vld [vmem:[%s0 + $0x4] sm:$0x1]
    %v2296 = vld [vmem:[%s0 + $0xc] sm:$0x1]
    %v2297 = vld [vmem:[%s0 + $0x14] sm:$0x1]
    %v2298 = vld [vmem:[%s0 + $0x1c] sm:$0x1]
    %v2299 = vld [vmem:[%s0 + $0x24] sm:$0x1]
    %v2300 = vld [vmem:[%s0 + $0x2c] sm:$0x1]
    %v2301 = vld [vmem:[%s0 + $0x34] sm:$0x1]
    %v2302 = vld [vmem:[%s0 + $0x3c] sm:$0x1]
    %v2303 = vld [vmem:[%s462] sm:$0xff]
    %v2304 = vld [vmem:[%s462 + $0x8] sm:$0x7f]
    %v2313 = vrot.slane %v2296, 7
    %v2314 = vsel %vm42, %v2313, %v2295
    %v2315 = vrot.slane %v2297, 6
    %v2316 = vsel %vm45, %v2315, %v2314
    %v2317 = vrot.slane %v2298, 5
    %v2318 = vsel %vm48, %v2317, %v2316
    %v2319 = vrot.slane %v2299, 4
    %v2320 = vsel %vm51, %v2319, %v2318
    %v2321 = vrot.slane %v2300, 3
    %v2322 = vsel %vm54, %v2321, %v2320
    %v2323 = vrot.slane %v2301, 2
    %v2324 = vsel %vm57, %v2323, %v2322
    %v2325 = vrot.slane %v2302, 1
    %v2326 = vsel %vm60, %v2325, %v2324
    %2327 = vrot.lane.b32.xlu0 %v2326, 83
    %v2328 = vpop.permute.xlu0 %2327
    %v2329 = vsel %vm62, %v2328, 0
    %v2332 = vsel %vm65, %v2304, 0
    %2334 = vmatprep.subr.mxu0 0.0
    %2335 = vmatpush1.msra.mxu0 %v2303
    %2336 = vmatprep.subr.mxu0 0.0
    %2337 = vmatpush1.msra.mxu0 %v2332
    %2338 = vmatprep.subr.mxu0 0.0
    %2339 = vmatpush1.msra.mxu0 0.0
    %2340 = vmatprep.subr.mxu0 0.0
    %2341 = vmatpush1.msra.mxu0 0.0
    %2342 = vmatprep.subr.mxu0 0.0
    %2343 = vmatpush1.msra.mxu0 0.0
    %2344 = vmatprep.subr.mxu0 0.0
    %2345 = vmatpush1.msra.mxu0 0.0
    %2346 = vmatprep.subr.mxu0 0.0
    %2347 = vmatpush1.msra.mxu0 0.0
    %2348 = vmatprep.subr.mxu0 0.0
    %2349 = vmatpush1.msra.mxu0 0.0
    %2350 = vmatprep.subr.mxu0 0.0
    %2351 = vmatpush1.msra.mxu0 0.0
    %2352 = vmatprep.subr.mxu0 0.0
    %2353 = vmatpush1.msra.mxu0 0.0
    %2354 = vmatprep.subr.mxu0 0.0
    %2355 = vmatpush1.msra.mxu0 0.0
    %2356 = vmatprep.subr.mxu0 0.0
    %2357 = vmatpush1.msra.mxu0 0.0
    %2358 = vmatprep.subr.mxu0 0.0
    %2359 = vmatpush1.msra.mxu0 0.0
    %2360 = vmatprep.subr.mxu0 0.0
    %2361 = vmatpush1.msra.mxu0 0.0
    %2362 = vmatprep.subr.mxu0 0.0
    %2363 = vmatpush1.msra.mxu0 0.0
    %2364 = vmatprep.subr.mxu0 0.0
    %2365 = vmatpush1.msra.mxu0 0.0
    %2366 = vmatprep.subr.mxu0 0.0
    %2367 = vmatpush1.msra.mxu0 0.0
    %2368 = vmatprep.subr.mxu0 0.0
    %2369 = vmatpush1.msra.mxu0 0.0
    %2370 = vmatprep.subr.mxu0 0.0
    %2371 = vmatpush1.msra.mxu0 0.0
    %2372 = vmatprep.subr.mxu0 0.0
    %2373 = vmatpush1.msra.mxu0 0.0
    %2374 = vmatprep.subr.mxu0 0.0
    %2375 = vmatpush1.msra.mxu0 0.0
    %2376 = vmatprep.subr.mxu0 0.0
    %2377 = vmatpush1.msra.mxu0 0.0
    %2378 = vmatprep.subr.mxu0 0.0
    %2379 = vmatpush1.msra.mxu0 0.0
    %2380 = vmatprep.subr.mxu0 0.0
    %2381 = vmatpush1.msra.mxu0 0.0
    %2382 = vmatprep.subr.mxu0 0.0
    %2383 = vmatpush1.msra.mxu0 0.0
    %2384 = vmatprep.subr.mxu0 0.0
    %2385 = vmatpush1.msra.mxu0 0.0
    %2386 = vmatprep.subr.mxu0 0.0
    %2387 = vmatpush1.msra.mxu0 0.0
    %2388 = vmatprep.subr.mxu0 0.0
    %2389 = vmatpush1.msra.mxu0 0.0
    %2390 = vmatprep.subr.mxu0 0.0
    %2391 = vmatpush1.msra.mxu0 0.0
    %2392 = vmatprep.subr.mxu0 0.0
    %2393 = vmatpush1.msra.mxu0 0.0
    %2394 = vmatprep.subr.mxu0 0.0
    %2395 = vmatpush1.msra.mxu0 0.0
    %2396 = vmatprep.subr.mxu0 0.0
    %2397 = vmatpush1.msra.mxu0 0.0
    %2398 = vmatprep.mubr.f32.mxu0 0.0
    %2399 = vmatmul.mubr.f32.gmra.mrb[0].mxu0 %v2329
    %v2400 = vpop.f32.mrb[0].mxu0
    %v2401 = vadd.f32 0.0, %v2400
    %v2402 = vpop.f32.mrb[0].mxu0
    %2403 = vdwg.mxu0
    %v2404 = vadd.f32 %v2294, %v2401
    %v2406 = vcombine.high %v2404, %v2404
    %v2408 = vunpack.c.l.s4 1966171168
    %v2409 = vunpack.c.0.s8 %v2408
    %v2410 = vlaneseq
    %v2411 = vshrl.u32 %v2410, 7
    %v2412 = vsub.s32 %v2409, %v2411
    %v2413 = vrot.slane %v2404, %v2412
    %v2415 = vunpack.c.l.s4 1966171168
    %v2416 = vunpack.c.0.s8 %v2415
    %v2417 = vlaneseq
    %v2418 = vshrl.u32 %v2417, 7
    %v2419 = vsub.s32 %v2416, %v2418
    %v2420 = vrot.slane %v2406, %v2419
    %v2421 = vcombine.high %v2413, %v2413
    %v2422 = vcombine.high %v2420, %v2420
    %v2424 = vunpack.c.l.s4 1966171168
    %v2425 = vunpack.c.0.s8 %v2424
    %v2426 = vlaneseq
    %v2427 = vshrl.u32 %v2426, 7
    %v2428 = vsub.s32 %v2425, %v2427
    %v2429 = vrot.slane %v2413, %v2428
    %v2431 = vunpack.c.l.s4 1966171168
    %v2432 = vunpack.c.0.s8 %v2431
    %v2433 = vlaneseq
    %v2434 = vshrl.u32 %v2433, 7
    %v2435 = vsub.s32 %v2432, %v2434
    %v2436 = vrot.slane %v2420, %v2435
    %v2438 = vunpack.c.l.s4 1966171168
    %v2439 = vunpack.c.0.s8 %v2438
    %v2440 = vlaneseq
    %v2441 = vshrl.u32 %v2440, 7
    %v2442 = vsub.s32 %v2439, %v2441
    %v2443 = vrot.slane %v2421, %v2442
    %v2445 = vunpack.c.l.s4 1966171168
    %v2446 = vunpack.c.0.s8 %v2445
    %v2447 = vlaneseq
    %v2448 = vshrl.u32 %v2447, 7
    %v2449 = vsub.s32 %v2446, %v2448
    %v2450 = vrot.slane %v2422, %v2449
    %v2451 = vcombine.high %v2429, %v2429
    %v2452 = vcombine.high %v2436, %v2436
    %v2453 = vcombine.high %v2443, %v2443
    %v2454 = vcombine.high %v2450, %v2450
    %2463 = vst [vmem:[#allocation2 + $0x3] sm:$0x1] %v2429
    %2464 = vst [vmem:[#allocation2 + $0x7] sm:$0x1] %v2443
    %2465 = vst [vmem:[#allocation2 + $0xb] sm:$0x1] %v2451
    %2466 = vst [vmem:[#allocation2 + $0xf] sm:$0x1] %v2453
    %2467 = vst [vmem:[#allocation2 + $0x13] sm:$0x1] %v2436
    %2468 = vst [vmem:[#allocation2 + $0x17] sm:$0x1] %v2450
    %2469 = vst [vmem:[#allocation2 + $0x1b] sm:$0x1] %v2452
    %2470 = vst [vmem:[#allocation2 + $0x1f] sm:$0x1] %v2454
    // Predicated region
    $region10: #{tpu_custom_call.1} parent=1 // pred_check
      _
    $region11: #{tpu_custom_call.1} parent=1 // pred_check_branch
      %2472 = sbr.rel (0) target = $region13
    $region12: #{tpu_custom_call.1} parent=1 // pred_region
      %s2474 = ssub.s32 512, 512
      %2475 = vsyncadd [#allocation3], %s2474
      %s2476 = sshll.u32 [#allocation2], 4
      %s2477 = int_to_ptr.vmem [resolvable:$true] %s2476
      %2482 = dma.vmem_to_hbm [thread:$0]  %s2477, 512, %s2, [#allocation3], 64, 64, 4
    $region13: #{tpu_custom_call.1} parent=1 // pred_fallthru
      _
    // Predicated region
    $region14: #{tpu_custom_call.1} parent=1 // pred_check
      _
    $region15: #{tpu_custom_call.1} parent=1 // pred_check_branch
      %2484 = sbr.rel (0) target = $region17
    $region16: #{tpu_custom_call.1} parent=1 // pred_region
      %2485 = dma.done [#allocation3], 512
    $region17: #{tpu_custom_call.1} parent=1 // pred_fallthru
      _
    %2486 = vsyncpa [#allocation3], 1

</llo_original>
